<compile_context>
chip_gen: v6e
topology: v6e:2x2x1
jax: 0.10.0
libtpu: 0.0.40
codegen_flags: <defaults>
</compile_context>

<pallas_src>
import functools
import math

import jax
import jax.numpy as jnp
from jax.experimental import pallas as pl
from jax.experimental.pallas import tpu as pltpu

KSIZE = 7
PAD = 3            # "same" padding for kernel_size 7
KK = KSIZE * KSIZE


def _spatial_attention_kernel(w_ref, masks_ref, x_ref, o_ref, sum_ref, max_ref,
                              *, W, HWp):
    """Grid = (batch tiles [parallel], channel tiles [arbitrary reduction])."""
    c_idx = pl.program_id(1)
    n_c = pl.num_programs(1)

    # ---- running channel statistics (sum for mean, running max) ------------
    @pl.when(c_idx == 0)
    def _init():
        sum_ref[...] = jnp.zeros_like(sum_ref)
        max_ref[...] = jnp.full_like(max_ref, -jnp.inf)

    x = x_ref[...]                                           # (b_t, c_t, HWp)
    sum_ref[...] += jnp.sum(x, axis=1, dtype=jnp.float32)
    max_ref[...] = jnp.maximum(max_ref[...],
                               jnp.max(x, axis=1).astype(jnp.float32))

    # ---- finalize: 7x7 same-padded conv over [avg, max] + sigmoid ----------
    @pl.when(c_idx == n_c - 1)
    def _finalize():
        # 1/C is folded into the avg-channel conv weights in the wrapper, so
        # the running channel-sum feeds the conv directly (no extra multiply).
        pooled = (sum_ref[...], max_ref[...])                # (b_t, HWp) f32 each
        masks = masks_ref[...]                               # (2*KSIZE, HWp) {0,1}

        # Streamed conv: for each (ci, kh) compute ONE row-shifted map (lane
        # roll on the flattened H*W axis + top/bottom border mask) and FMA it
        # into 7 per-kw accumulators with its 7 scalar weights, then discard.
        # Live (b_t, HWp) f32 temporaries: 7 accs + 1 shifted + 2 pooled.
        accs = [None] * KSIZE
        for ci in range(2):
            base = pooled[ci]
            for kh in range(KSIZE):
                dh = kh - PAD
                if dh == 0:
                    shifted = base
                else:
                    shifted = pltpu.roll(base, shift=(-dh * W) % HWp, axis=1)
                    shifted = shifted * masks[kh:kh + 1, :]
                for kw in range(KSIZE):
                    w_s = w_ref[ci * KK + kh * KSIZE + kw]   # SMEM scalar
                    term = w_s * shifted
                    accs[kw] = term if accs[kw] is None else accs[kw] + term

        # Column (dw) stage: one lane roll + left/right border mask per kw.
        out = None
        for kw in range(KSIZE):
            dw = kw - PAD
            s = accs[kw]
            if dw != 0:
                s = pltpu.roll(s, shift=(-dw) % HWp, axis=1)
                s = s * masks[KSIZE + kw:KSIZE + kw + 1, :]
            out = s if out is None else out + s

        o_ref[...] = jax.nn.sigmoid(out).astype(o_ref.dtype)


def _physical_vmem_bytes():
    try:
        return int(pltpu.get_tpu_info().vmem_capacity_bytes)
    except Exception:
        return 64 << 20          # conservative fallback = v7x per-core VMEM


def _vmem_usage_bytes(b_t, c_t, HWp, itemsize, n_buf):
    """Estimate of live VMEM: pipelined blocks + accumulators + finalize temps."""
    blk_in = b_t * c_t * HWp * itemsize          # pipelined input block
    row_f32 = b_t * HWp * 4
    masks_b = 2 * KSIZE * HWp * 4
    out_b = b_t * HWp * itemsize
    scratch = 2 * row_f32                        # running sum + running max
    fin_live = 11 * row_f32                      # 7 accs + shifted + term + pooled
    return n_buf * blk_in + 2 * masks_b + 2 * out_b + scratch + fin_live


def _pick_tiles(B, C, HWp, itemsize, phys_vmem, n_buf):
    """Aligned batch/channel tiles + a vmem limit derived from actual usage."""
    # Batch tile: the (b_t, HWp) output block's second-minor dim must be a
    # multiple of 8 or the full B.  Prefer >=2 batch tiles so v7x's two
    # TensorCores both get work on the "parallel" axis (no-op on v5e/v6e).
    b_aligned = [d for d in range(1, B + 1)
                 if B % d == 0 and (d % 8 == 0 or d == B)]
    b_multi = [d for d in b_aligned if d < B]
    b_t = max(b_multi) if b_multi else B

    # Channel tile: (c_t, HWp) is the input block's minor pair -> c_t must be a
    # multiple of 8 or the full C.  Largest aligned divisor under the budget.
    c_aligned = sorted(d for d in range(1, C + 1)
                       if C % d == 0 and (d % 8 == 0 or d == C))
    block_budget = min(phys_vmem // 6, 24 << 20)  # ~10.7 MiB v7x, ~21 MiB v5e/v6e
    fits = [d for d in c_aligned
            if b_t * d * HWp * itemsize <= block_budget]
    c_t = max(fits) if fits else c_aligned[0]

    # Shrink further if the full live estimate overshoots the per-core cap.
    cap = (phys_vmem * 3) // 4
    while (_vmem_usage_bytes(b_t, c_t, HWp, itemsize, n_buf) > cap
           and c_t > c_aligned[0]):
        c_t = max(d for d in c_aligned if d < c_t)

    usage = _vmem_usage_bytes(b_t, c_t, HWp, itemsize, n_buf)
    vmem_limit = int(max(32 << 20, min(cap, usage + (8 << 20))))
    return b_t, c_t, vmem_limit


def _pallas_forward(w_flat, masks, x_flat, *, B, C, W, HWp, b_t, c_t,
                    vmem_limit, n_buf):
    kernel = functools.partial(_spatial_attention_kernel, W=W, HWp=HWp)

    if n_buf > 2:
        x_spec = pl.BlockSpec((b_t, c_t, HWp), lambda b, c: (b, c, 0),
                              pipeline_mode=pl.Buffered(n_buf))
    else:
        x_spec = pl.BlockSpec((b_t, c_t, HWp), lambda b, c: (b, c, 0))

    return pl.pallas_call(
        kernel,
        out_shape=jax.ShapeDtypeStruct((B, HWp), x_flat.dtype),
        grid_spec=pltpu.PrefetchScalarGridSpec(
            num_scalar_prefetch=0,
            grid=(B // b_t, C // c_t),
            in_specs=[
                # conv weights: 98 scalars in SMEM for cheap scalar reads
                pl.BlockSpec(memory_space=pltpu.MemorySpace.SMEM),
                # border masks: small constant VMEM block
                pl.BlockSpec((2 * KSIZE, HWp), lambda b, c: (0, 0)),
                # channel-tiled, lane-dense input block
                x_spec,
            ],
            out_specs=pl.BlockSpec((b_t, HWp), lambda b, c: (b, 0)),
            scratch_shapes=[
                pltpu.VMEM((b_t, HWp), jnp.float32),   # running channel sum
                pltpu.VMEM((b_t, HWp), jnp.float32),   # running channel max
            ],
        ),
        compiler_params=pltpu.CompilerParams(
            dimension_semantics=("parallel", "arbitrary"),
            vmem_limit_bytes=vmem_limit,
        ),
    )(w_flat, masks, x_flat)


def spatial_attention(x, weight):
    """x: (B, C, H, W); weight: (1, 2, 7, 7) -> attention map (B, 1, H, W)."""
    B, C, H, W = x.shape
    HW = H * W
    HWp = max(128, ((HW + 127) // 128) * 128)      # lane-dense, 128-multiple minor

    # Fold the 1/C mean scale into the avg-channel conv weights (index 0 matches
    # torch.cat([avg, max], dim=1) / weight layout (1, 2, 7, 7)).
    w2 = weight.astype(jnp.float32).reshape(2, KK)
    w2 = w2.at[0].multiply(1.0 / C)
    w_flat = w2.reshape(-1)                        # (98,)

    # Flatten H*W onto the lane axis; zero-pad (NOT -inf) so max-pool stays
    # finite and masked taps contribute exactly 0.
    x_flat = x.reshape(B, C, HW)
    if HWp != HW:
        x_flat = jnp.pad(x_flat, ((0, 0), (0, 0), (0, HWp - HW)))

    # {0,1} border masks over the padded, flattened axis: rows 0..6 = row (dh)
    # masks, rows 7..13 = column (dw) masks; pad lanes are zeroed everywhere.
    pos = jnp.arange(HWp, dtype=jnp.int32)
    in_img = pos < HW
    row = jnp.minimum(pos, HW - 1) // W
    col = jnp.minimum(pos, HW - 1) % W
    row_masks = jnp.stack(
        [(in_img & (row + dh >= 0) & (row + dh < H)).astype(jnp.float32)
         for dh in range(-PAD, PAD + 1)])
    col_masks = jnp.stack(
        [(in_img & (col + dw >= 0) & (col + dw < W)).astype(jnp.float32)
         for dw in range(-PAD, PAD + 1)])
    masks = jnp.concatenate([row_masks, col_masks], axis=0)   # (14, HWp)

    n_buf = 3
    phys = _physical_vmem_bytes()
    b_t, c_t, vmem_limit = _pick_tiles(B, C, HWp, x.dtype.itemsize, phys, n_buf)

    try:
        out2d = _pallas_forward(w_flat, masks, x_flat, B=B, C=C, W=W, HWp=HWp,
                                b_t=b_t, c_t=c_t, vmem_limit=vmem_limit,
                                n_buf=n_buf)
    except Exception:
        # Fallback if pipeline_mode=pl.Buffered is unavailable in this jax:
        # identical kernel, default double buffering.
        out2d = _pallas_forward(w_flat, masks, x_flat, B=B, C=C, W=W, HWp=HWp,
                                b_t=b_t, c_t=c_t, vmem_limit=vmem_limit,
                                n_buf=2)

    return out2d[:, :HW].reshape(B, 1, H, W)


def _reference(x, weight):
    # pure-JAX reference for validation (PyTorch forward semantics)
    avg_out = jnp.mean(x, axis=1, keepdims=True)
    max_out = jnp.max(x, axis=1, keepdims=True)
    cat = jnp.concatenate([avg_out, max_out], axis=1)          # (B, 2, H, W)
    out = jax.lax.conv_general_dilated(
        cat, weight, window_strides=(1, 1), padding=((PAD, PAD), (PAD, PAD)),
        dimension_numbers=("NCHW", "OIHW", "NCHW"))
    return jax.nn.sigmoid(out)


if __name__ == "__main__":
    key = jax.random.PRNGKey(0)
    kx, kw = jax.random.split(key)

    B, C, H, W = 2, 4, 16, 16
    x = jax.random.normal(kx, (B, C, H, W), dtype=jnp.float32)

    # Deterministic kaiming-normal (fan_in, relu) init for conv1 weight,
    # shape (out=1, in=2, 7, 7), no bias (matches nn.Conv2d(2, 1, 7, bias=False)).
    fan_in = 2 * KSIZE * KSIZE
    std = math.sqrt(2.0 / fan_in)
    weight = std * jax.random.normal(kw, (1, 2, KSIZE, KSIZE), dtype=jnp.float32)

    out = spatial_attention(x, weight)
    out = jax.block_until_ready(out)

    ref = _reference(x, weight)
    assert out.shape == (B, 1, H, W)
    assert jnp.allclose(out, ref, atol=1e-4, rtol=1e-4), "mismatch vs reference"

    print("KERNEL_OK")
</pallas_src>

<mosaic_0001>
module attributes {stable_mosaic.version = 11 : i64} {
  func.func @_spatial_attention_kernel(%arg0: i32, %arg1: i32, %arg2: memref<98xf32, #tpu.memory_space<smem>>, %arg3: memref<14x256xf32, #tpu.memory_space<vmem>>, %arg4: memref<2x4x256xf32, #tpu.memory_space<vmem>>, %arg5: memref<2x256xf32, #tpu.memory_space<vmem>>, %arg6: memref<2x256xf32, #tpu.memory_space<vmem>>, %arg7: memref<2x256xf32, #tpu.memory_space<vmem>>) attributes {dimension_semantics = [#tpu.dimension_semantics<parallel>, #tpu.dimension_semantics<arbitrary>], iteration_bounds = array<i64: 1, 1>, scalar_prefetch = 0 : i64, scratch_operands = 2 : i64, tpu.core_type = #tpu.core_type<tc>, window_params = [{transform_indices = @transform_0, window_bounds = array<i64: 98>}, {pipeline_mode = #tpu.pipeline_mode<synchronous>, transform_indices = @transform_1, window_bounds = array<i64: 14, 256>}, {transform_indices = @transform_2, window_bounds = array<i64: 2, 4, 256>}, {transform_indices = @transform_3, window_bounds = array<i64: 2, 256>}]} {
    %c0_i32 = arith.constant 0 : i32
    %0 = arith.cmpi eq, %arg1, %c0_i32 : i32
    %1 = arith.extui %0 : i1 to i32
    %c0_i32_0 = arith.constant 0 : i32
    %2 = arith.cmpi ne, %1, %c0_i32_0 : i32
    scf.if %2 {
      %cst_14 = arith.constant 0.000000e+00 : f32
      %15 = vector.broadcast %cst_14 : f32 to vector<2x256xf32>
      %c0_15 = arith.constant 0 : index
      %c0_16 = arith.constant 0 : index
      %16 = vector.load %arg6[%c0_15, %c0_16] : memref<2x256xf32, #tpu.memory_space<vmem>>, vector<2x256xf32>
      tpu.vector_store %arg6[%c0_15, %c0_16], %15 {strides = array<i32>} : memref<2x256xf32, #tpu.memory_space<vmem>>, vector<2x256xf32>,
      %cst_17 = arith.constant 0xFF800000 : f32
      %17 = vector.broadcast %cst_17 : f32 to vector<2x256xf32>
      %c0_18 = arith.constant 0 : index
      %c0_19 = arith.constant 0 : index
      %18 = vector.load %arg7[%c0_18, %c0_19] : memref<2x256xf32, #tpu.memory_space<vmem>>, vector<2x256xf32>
      tpu.vector_store %arg7[%c0_18, %c0_19], %17 {strides = array<i32>} : memref<2x256xf32, #tpu.memory_space<vmem>>, vector<2x256xf32>,
    } else {
    }
    %c0 = arith.constant 0 : index
    %c0_1 = arith.constant 0 : index
    %c0_2 = arith.constant 0 : index
    %3 = vector.load %arg4[%c0, %c0_1, %c0_2] : memref<2x4x256xf32, #tpu.memory_space<vmem>>, vector<2x4x256xf32>
    %c0_3 = arith.constant 0 : index
    %c0_4 = arith.constant 0 : index
    %4 = vector.load %arg6[%c0_3, %c0_4] : memref<2x256xf32, #tpu.memory_space<vmem>>, vector<2x256xf32>
    %cst = arith.constant dense<0.000000e+00> : vector<2x256xf32>
    %5 = vector.multi_reduction <add>, %3, %cst [1] : vector<2x4x256xf32> to vector<2x256xf32>
    %6 = arith.addf %4, %5 : vector<2x256xf32>
    %c0_5 = arith.constant 0 : index
    %c0_6 = arith.constant 0 : index
    %7 = vector.load %arg6[%c0_5, %c0_6] : memref<2x256xf32, #tpu.memory_space<vmem>>, vector<2x256xf32>
    tpu.vector_store %arg6[%c0_5, %c0_6], %6 {strides = array<i32>} : memref<2x256xf32, #tpu.memory_space<vmem>>, vector<2x256xf32>,
    %c0_7 = arith.constant 0 : index
    %c0_8 = arith.constant 0 : index
    %8 = vector.load %arg7[%c0_7, %c0_8] : memref<2x256xf32, #tpu.memory_space<vmem>>, vector<2x256xf32>
    %cst_9 = arith.constant dense<0xFF800000> : vector<2x256xf32>
    %9 = vector.multi_reduction <maximumf>, %3, %cst_9 [1] : vector<2x4x256xf32> to vector<2x256xf32>
    %10 = arith.maximumf %8, %9 : vector<2x256xf32>
    %c0_10 = arith.constant 0 : index
    %c0_11 = arith.constant 0 : index
    %11 = vector.load %arg7[%c0_10, %c0_11] : memref<2x256xf32, #tpu.memory_space<vmem>>, vector<2x256xf32>
    tpu.vector_store %arg7[%c0_10, %c0_11], %10 {strides = array<i32>} : memref<2x256xf32, #tpu.memory_space<vmem>>, vector<2x256xf32>,
    %c0_i32_12 = arith.constant 0 : i32
    %12 = arith.cmpi eq, %arg1, %c0_i32_12 : i32
    %13 = arith.extui %12 : i1 to i32
    %c0_i32_13 = arith.constant 0 : i32
    %14 = arith.cmpi ne, %13, %c0_i32_13 : i32
    scf.if %14 {
      %c0_14 = arith.constant 0 : index
      %c0_15 = arith.constant 0 : index
      %15 = vector.load %arg6[%c0_14, %c0_15] : memref<2x256xf32, #tpu.memory_space<vmem>>, vector<2x256xf32>
      %c0_16 = arith.constant 0 : index
      %c0_17 = arith.constant 0 : index
      %16 = vector.load %arg7[%c0_16, %c0_17] : memref<2x256xf32, #tpu.memory_space<vmem>>, vector<2x256xf32>
      %c0_18 = arith.constant 0 : index
      %c0_19 = arith.constant 0 : index
      %17 = vector.load %arg3[%c0_18, %c0_19] : memref<14x256xf32, #tpu.memory_space<vmem>>, vector<14x256xf32>
      %c48_i32 = arith.constant 48 : i32
      %18 = tpu.dynamic_rotate %15 by %c48_i32 dim 1 : vector<2x256xf32>, i32 -> vector<2x256xf32>
      %19 = vector.extract_strided_slice %17 {offsets = [0, 0], sizes = [1, 256], strides = [1, 1]} : vector<14x256xf32> to vector<1x256xf32>
      %20 = vector.broadcast %19 : vector<1x256xf32> to vector<2x256xf32>
      %21 = arith.mulf %18, %20 : vector<2x256xf32>
      %c0_20 = arith.constant 0 : index
      %22 = memref.load %arg2[%c0_20] : memref<98xf32, #tpu.memory_space<smem>>
      %23 = vector.broadcast %22 : f32 to vector<2x256xf32>
      %24 = arith.mulf %23, %21 : vector<2x256xf32>
      %c1 = arith.constant 1 : index
      %25 = memref.load %arg2[%c1] : memref<98xf32, #tpu.memory_space<smem>>
      %26 = vector.broadcast %25 : f32 to vector<2x256xf32>
      %27 = arith.mulf %26, %21 : vector<2x256xf32>
      %c2 = arith.constant 2 : index
      %28 = memref.load %arg2[%c2] : memref<98xf32, #tpu.memory_space<smem>>
      %29 = vector.broadcast %28 : f32 to vector<2x256xf32>
      %30 = arith.mulf %29, %21 : vector<2x256xf32>
      %c3 = arith.constant 3 : index
      %31 = memref.load %arg2[%c3] : memref<98xf32, #tpu.memory_space<smem>>
      %32 = vector.broadcast %31 : f32 to vector<2x256xf32>
      %33 = arith.mulf %32, %21 : vector<2x256xf32>
      %c4 = arith.constant 4 : index
      %34 = memref.load %arg2[%c4] : memref<98xf32, #tpu.memory_space<smem>>
      %35 = vector.broadcast %34 : f32 to vector<2x256xf32>
      %36 = arith.mulf %35, %21 : vector<2x256xf32>
      %c5 = arith.constant 5 : index
      %37 = memref.load %arg2[%c5] : memref<98xf32, #tpu.memory_space<smem>>
      %38 = vector.broadcast %37 : f32 to vector<2x256xf32>
      %39 = arith.mulf %38, %21 : vector<2x256xf32>
      %c6 = arith.constant 6 : index
      %40 = memref.load %arg2[%c6] : memref<98xf32, #tpu.memory_space<smem>>
      %41 = vector.broadcast %40 : f32 to vector<2x256xf32>
      %42 = arith.mulf %41, %21 : vector<2x256xf32>
      %c32_i32 = arith.constant 32 : i32
      %43 = tpu.dynamic_rotate %15 by %c32_i32 dim 1 : vector<2x256xf32>, i32 -> vector<2x256xf32>
      %44 = vector.extract_strided_slice %17 {offsets = [1, 0], sizes = [1, 256], strides = [1, 1]} : vector<14x256xf32> to vector<1x256xf32>
      %45 = vector.broadcast %44 : vector<1x256xf32> to vector<2x256xf32>
      %46 = arith.mulf %43, %45 : vector<2x256xf32>
      %c7 = arith.constant 7 : index
      %47 = memref.load %arg2[%c7] : memref<98xf32, #tpu.memory_space<smem>>
      %48 = vector.broadcast %47 : f32 to vector<2x256xf32>
      %49 = arith.mulf %48, %46 : vector<2x256xf32>
      %50 = arith.addf %24, %49 : vector<2x256xf32>
      %c8 = arith.constant 8 : index
      %51 = memref.load %arg2[%c8] : memref<98xf32, #tpu.memory_space<smem>>
      %52 = vector.broadcast %51 : f32 to vector<2x256xf32>
      %53 = arith.mulf %52, %46 : vector<2x256xf32>
      %54 = arith.addf %27, %53 : vector<2x256xf32>
      %c9 = arith.constant 9 : index
      %55 = memref.load %arg2[%c9] : memref<98xf32, #tpu.memory_space<smem>>
      %56 = vector.broadcast %55 : f32 to vector<2x256xf32>
      %57 = arith.mulf %56, %46 : vector<2x256xf32>
      %58 = arith.addf %30, %57 : vector<2x256xf32>
      %c10 = arith.constant 10 : index
      %59 = memref.load %arg2[%c10] : memref<98xf32, #tpu.memory_space<smem>>
      %60 = vector.broadcast %59 : f32 to vector<2x256xf32>
      %61 = arith.mulf %60, %46 : vector<2x256xf32>
      %62 = arith.addf %33, %61 : vector<2x256xf32>
      %c11 = arith.constant 11 : index
      %63 = memref.load %arg2[%c11] : memref<98xf32, #tpu.memory_space<smem>>
      %64 = vector.broadcast %63 : f32 to vector<2x256xf32>
      %65 = arith.mulf %64, %46 : vector<2x256xf32>
      %66 = arith.addf %36, %65 : vector<2x256xf32>
      %c12 = arith.constant 12 : index
      %67 = memref.load %arg2[%c12] : memref<98xf32, #tpu.memory_space<smem>>
      %68 = vector.broadcast %67 : f32 to vector<2x256xf32>
      %69 = arith.mulf %68, %46 : vector<2x256xf32>
      %70 = arith.addf %39, %69 : vector<2x256xf32>
      %c13 = arith.constant 13 : index
      %71 = memref.load %arg2[%c13] : memref<98xf32, #tpu.memory_space<smem>>
      %72 = vector.broadcast %71 : f32 to vector<2x256xf32>
      %73 = arith.mulf %72, %46 : vector<2x256xf32>
      %74 = arith.addf %42, %73 : vector<2x256xf32>
      %c16_i32 = arith.constant 16 : i32
      %75 = tpu.dynamic_rotate %15 by %c16_i32 dim 1 : vector<2x256xf32>, i32 -> vector<2x256xf32>
      %76 = vector.extract_strided_slice %17 {offsets = [2, 0], sizes = [1, 256], strides = [1, 1]} : vector<14x256xf32> to vector<1x256xf32>
      %77 = vector.broadcast %76 : vector<1x256xf32> to vector<2x256xf32>
      %78 = arith.mulf %75, %77 : vector<2x256xf32>
      %c14 = arith.constant 14 : index
      %79 = memref.load %arg2[%c14] : memref<98xf32, #tpu.memory_space<smem>>
      %80 = vector.broadcast %79 : f32 to vector<2x256xf32>
      %81 = arith.mulf %80, %78 : vector<2x256xf32>
      %82 = arith.addf %50, %81 : vector<2x256xf32>
      %c15 = arith.constant 15 : index
      %83 = memref.load %arg2[%c15] : memref<98xf32, #tpu.memory_space<smem>>
      %84 = vector.broadcast %83 : f32 to vector<2x256xf32>
      %85 = arith.mulf %84, %78 : vector<2x256xf32>
      %86 = arith.addf %54, %85 : vector<2x256xf32>
      %c16 = arith.constant 16 : index
      %87 = memref.load %arg2[%c16] : memref<98xf32, #tpu.memory_space<smem>>
      %88 = vector.broadcast %87 : f32 to vector<2x256xf32>
      %89 = arith.mulf %88, %78 : vector<2x256xf32>
      %90 = arith.addf %58, %89 : vector<2x256xf32>
      %c17 = arith.constant 17 : index
      %91 = memref.load %arg2[%c17] : memref<98xf32, #tpu.memory_space<smem>>
      %92 = vector.broadcast %91 : f32 to vector<2x256xf32>
      %93 = arith.mulf %92, %78 : vector<2x256xf32>
      %94 = arith.addf %62, %93 : vector<2x256xf32>
      %c18 = arith.constant 18 : index
      %95 = memref.load %arg2[%c18] : memref<98xf32, #tpu.memory_space<smem>>
      %96 = vector.broadcast %95 : f32 to vector<2x256xf32>
      %97 = arith.mulf %96, %78 : vector<2x256xf32>
      %98 = arith.addf %66, %97 : vector<2x256xf32>
      %c19 = arith.constant 19 : index
      %99 = memref.load %arg2[%c19] : memref<98xf32, #tpu.memory_space<smem>>
      %100 = vector.broadcast %99 : f32 to vector<2x256xf32>
      %101 = arith.mulf %100, %78 : vector<2x256xf32>
      %102 = arith.addf %70, %101 : vector<2x256xf32>
      %c20 = arith.constant 20 : index
      %103 = memref.load %arg2[%c20] : memref<98xf32, #tpu.memory_space<smem>>
      %104 = vector.broadcast %103 : f32 to vector<2x256xf32>
      %105 = arith.mulf %104, %78 : vector<2x256xf32>
      %106 = arith.addf %74, %105 : vector<2x256xf32>
      %c21 = arith.constant 21 : index
      %107 = memref.load %arg2[%c21] : memref<98xf32, #tpu.memory_space<smem>>
      %108 = vector.broadcast %107 : f32 to vector<2x256xf32>
      %109 = arith.mulf %108, %15 : vector<2x256xf32>
      %110 = arith.addf %82, %109 : vector<2x256xf32>
      %c22 = arith.constant 22 : index
      %111 = memref.load %arg2[%c22] : memref<98xf32, #tpu.memory_space<smem>>
      %112 = vector.broadcast %111 : f32 to vector<2x256xf32>
      %113 = arith.mulf %112, %15 : vector<2x256xf32>
      %114 = arith.addf %86, %113 : vector<2x256xf32>
      %c23 = arith.constant 23 : index
      %115 = memref.load %arg2[%c23] : memref<98xf32, #tpu.memory_space<smem>>
      %116 = vector.broadcast %115 : f32 to vector<2x256xf32>
      %117 = arith.mulf %116, %15 : vector<2x256xf32>
      %118 = arith.addf %90, %117 : vector<2x256xf32>
      %c24 = arith.constant 24 : index
      %119 = memref.load %arg2[%c24] : memref<98xf32, #tpu.memory_space<smem>>
      %120 = vector.broadcast %119 : f32 to vector<2x256xf32>
      %121 = arith.mulf %120, %15 : vector<2x256xf32>
      %122 = arith.addf %94, %121 : vector<2x256xf32>
      %c25 = arith.constant 25 : index
      %123 = memref.load %arg2[%c25] : memref<98xf32, #tpu.memory_space<smem>>
      %124 = vector.broadcast %123 : f32 to vector<2x256xf32>
      %125 = arith.mulf %124, %15 : vector<2x256xf32>
      %126 = arith.addf %98, %125 : vector<2x256xf32>
      %c26 = arith.constant 26 : index
      %127 = memref.load %arg2[%c26] : memref<98xf32, #tpu.memory_space<smem>>
      %128 = vector.broadcast %127 : f32 to vector<2x256xf32>
      %129 = arith.mulf %128, %15 : vector<2x256xf32>
      %130 = arith.addf %102, %129 : vector<2x256xf32>
      %c27 = arith.constant 27 : index
      %131 = memref.load %arg2[%c27] : memref<98xf32, #tpu.memory_space<smem>>
      %132 = vector.broadcast %131 : f32 to vector<2x256xf32>
      %133 = arith.mulf %132, %15 : vector<2x256xf32>
      %134 = arith.addf %106, %133 : vector<2x256xf32>
      %c240_i32 = arith.constant 240 : i32
      %135 = tpu.dynamic_rotate %15 by %c240_i32 dim 1 : vector<2x256xf32>, i32 -> vector<2x256xf32>
      %136 = vector.extract_strided_slice %17 {offsets = [4, 0], sizes = [1, 256], strides = [1, 1]} : vector<14x256xf32> to vector<1x256xf32>
      %137 = vector.broadcast %136 : vector<1x256xf32> to vector<2x256xf32>
      %138 = arith.mulf %135, %137 : vector<2x256xf32>
      %c28 = arith.constant 28 : index
      %139 = memref.load %arg2[%c28] : memref<98xf32, #tpu.memory_space<smem>>
      %140 = vector.broadcast %139 : f32 to vector<2x256xf32>
      %141 = arith.mulf %140, %138 : vector<2x256xf32>
      %142 = arith.addf %110, %141 : vector<2x256xf32>
      %c29 = arith.constant 29 : index
      %143 = memref.load %arg2[%c29] : memref<98xf32, #tpu.memory_space<smem>>
      %144 = vector.broadcast %143 : f32 to vector<2x256xf32>
      %145 = arith.mulf %144, %138 : vector<2x256xf32>
      %146 = arith.addf %114, %145 : vector<2x256xf32>
      %c30 = arith.constant 30 : index
      %147 = memref.load %arg2[%c30] : memref<98xf32, #tpu.memory_space<smem>>
      %148 = vector.broadcast %147 : f32 to vector<2x256xf32>
      %149 = arith.mulf %148, %138 : vector<2x256xf32>
      %150 = arith.addf %118, %149 : vector<2x256xf32>
      %c31 = arith.constant 31 : index
      %151 = memref.load %arg2[%c31] : memref<98xf32, #tpu.memory_space<smem>>
      %152 = vector.broadcast %151 : f32 to vector<2x256xf32>
      %153 = arith.mulf %152, %138 : vector<2x256xf32>
      %154 = arith.addf %122, %153 : vector<2x256xf32>
      %c32 = arith.constant 32 : index
      %155 = memref.load %arg2[%c32] : memref<98xf32, #tpu.memory_space<smem>>
      %156 = vector.broadcast %155 : f32 to vector<2x256xf32>
      %157 = arith.mulf %156, %138 : vector<2x256xf32>
      %158 = arith.addf %126, %157 : vector<2x256xf32>
      %c33 = arith.constant 33 : index
      %159 = memref.load %arg2[%c33] : memref<98xf32, #tpu.memory_space<smem>>
      %160 = vector.broadcast %159 : f32 to vector<2x256xf32>
      %161 = arith.mulf %160, %138 : vector<2x256xf32>
      %162 = arith.addf %130, %161 : vector<2x256xf32>
      %c34 = arith.constant 34 : index
      %163 = memref.load %arg2[%c34] : memref<98xf32, #tpu.memory_space<smem>>
      %164 = vector.broadcast %163 : f32 to vector<2x256xf32>
      %165 = arith.mulf %164, %138 : vector<2x256xf32>
      %166 = arith.addf %134, %165 : vector<2x256xf32>
      %c224_i32 = arith.constant 224 : i32
      %167 = tpu.dynamic_rotate %15 by %c224_i32 dim 1 : vector<2x256xf32>, i32 -> vector<2x256xf32>
      %168 = vector.extract_strided_slice %17 {offsets = [5, 0], sizes = [1, 256], strides = [1, 1]} : vector<14x256xf32> to vector<1x256xf32>
      %169 = vector.broadcast %168 : vector<1x256xf32> to vector<2x256xf32>
      %170 = arith.mulf %167, %169 : vector<2x256xf32>
      %c35 = arith.constant 35 : index
      %171 = memref.load %arg2[%c35] : memref<98xf32, #tpu.memory_space<smem>>
      %172 = vector.broadcast %171 : f32 to vector<2x256xf32>
      %173 = arith.mulf %172, %170 : vector<2x256xf32>
      %174 = arith.addf %142, %173 : vector<2x256xf32>
      %c36 = arith.constant 36 : index
      %175 = memref.load %arg2[%c36] : memref<98xf32, #tpu.memory_space<smem>>
      %176 = vector.broadcast %175 : f32 to vector<2x256xf32>
      %177 = arith.mulf %176, %170 : vector<2x256xf32>
      %178 = arith.addf %146, %177 : vector<2x256xf32>
      %c37 = arith.constant 37 : index
      %179 = memref.load %arg2[%c37] : memref<98xf32, #tpu.memory_space<smem>>
      %180 = vector.broadcast %179 : f32 to vector<2x256xf32>
      %181 = arith.mulf %180, %170 : vector<2x256xf32>
      %182 = arith.addf %150, %181 : vector<2x256xf32>
      %c38 = arith.constant 38 : index
      %183 = memref.load %arg2[%c38] : memref<98xf32, #tpu.memory_space<smem>>
      %184 = vector.broadcast %183 : f32 to vector<2x256xf32>
      %185 = arith.mulf %184, %170 : vector<2x256xf32>
      %186 = arith.addf %154, %185 : vector<2x256xf32>
      %c39 = arith.constant 39 : index
      %187 = memref.load %arg2[%c39] : memref<98xf32, #tpu.memory_space<smem>>
      %188 = vector.broadcast %187 : f32 to vector<2x256xf32>
      %189 = arith.mulf %188, %170 : vector<2x256xf32>
      %190 = arith.addf %158, %189 : vector<2x256xf32>
      %c40 = arith.constant 40 : index
      %191 = memref.load %arg2[%c40] : memref<98xf32, #tpu.memory_space<smem>>
      %192 = vector.broadcast %191 : f32 to vector<2x256xf32>
      %193 = arith.mulf %192, %170 : vector<2x256xf32>
      %194 = arith.addf %162, %193 : vector<2x256xf32>
      %c41 = arith.constant 41 : index
      %195 = memref.load %arg2[%c41] : memref<98xf32, #tpu.memory_space<smem>>
      %196 = vector.broadcast %195 : f32 to vector<2x256xf32>
      %197 = arith.mulf %196, %170 : vector<2x256xf32>
      %198 = arith.addf %166, %197 : vector<2x256xf32>
      %c208_i32 = arith.constant 208 : i32
      %199 = tpu.dynamic_rotate %15 by %c208_i32 dim 1 : vector<2x256xf32>, i32 -> vector<2x256xf32>
      %200 = vector.extract_strided_slice %17 {offsets = [6, 0], sizes = [1, 256], strides = [1, 1]} : vector<14x256xf32> to vector<1x256xf32>
      %201 = vector.broadcast %200 : vector<1x256xf32> to vector<2x256xf32>
      %202 = arith.mulf %199, %201 : vector<2x256xf32>
      %c42 = arith.constant 42 : index
      %203 = memref.load %arg2[%c42] : memref<98xf32, #tpu.memory_space<smem>>
      %204 = vector.broadcast %203 : f32 to vector<2x256xf32>
      %205 = arith.mulf %204, %202 : vector<2x256xf32>
      %206 = arith.addf %174, %205 : vector<2x256xf32>
      %c43 = arith.constant 43 : index
      %207 = memref.load %arg2[%c43] : memref<98xf32, #tpu.memory_space<smem>>
      %208 = vector.broadcast %207 : f32 to vector<2x256xf32>
      %209 = arith.mulf %208, %202 : vector<2x256xf32>
      %210 = arith.addf %178, %209 : vector<2x256xf32>
      %c44 = arith.constant 44 : index
      %211 = memref.load %arg2[%c44] : memref<98xf32, #tpu.memory_space<smem>>
      %212 = vector.broadcast %211 : f32 to vector<2x256xf32>
      %213 = arith.mulf %212, %202 : vector<2x256xf32>
      %214 = arith.addf %182, %213 : vector<2x256xf32>
      %c45 = arith.constant 45 : index
      %215 = memref.load %arg2[%c45] : memref<98xf32, #tpu.memory_space<smem>>
      %216 = vector.broadcast %215 : f32 to vector<2x256xf32>
      %217 = arith.mulf %216, %202 : vector<2x256xf32>
      %218 = arith.addf %186, %217 : vector<2x256xf32>
      %c46 = arith.constant 46 : index
      %219 = memref.load %arg2[%c46] : memref<98xf32, #tpu.memory_space<smem>>
      %220 = vector.broadcast %219 : f32 to vector<2x256xf32>
      %221 = arith.mulf %220, %202 : vector<2x256xf32>
      %222 = arith.addf %190, %221 : vector<2x256xf32>
      %c47 = arith.constant 47 : index
      %223 = memref.load %arg2[%c47] : memref<98xf32, #tpu.memory_space<smem>>
      %224 = vector.broadcast %223 : f32 to vector<2x256xf32>
      %225 = arith.mulf %224, %202 : vector<2x256xf32>
      %226 = arith.addf %194, %225 : vector<2x256xf32>
      %c48 = arith.constant 48 : index
      %227 = memref.load %arg2[%c48] : memref<98xf32, #tpu.memory_space<smem>>
      %228 = vector.broadcast %227 : f32 to vector<2x256xf32>
      %229 = arith.mulf %228, %202 : vector<2x256xf32>
      %230 = arith.addf %198, %229 : vector<2x256xf32>
      %c48_i32_21 = arith.constant 48 : i32
      %231 = tpu.dynamic_rotate %16 by %c48_i32_21 dim 1 : vector<2x256xf32>, i32 -> vector<2x256xf32>
      %232 = vector.extract_strided_slice %17 {offsets = [0, 0], sizes = [1, 256], strides = [1, 1]} : vector<14x256xf32> to vector<1x256xf32>
      %233 = vector.broadcast %232 : vector<1x256xf32> to vector<2x256xf32>
      %234 = arith.mulf %231, %233 : vector<2x256xf32>
      %c49 = arith.constant 49 : index
      %235 = memref.load %arg2[%c49] : memref<98xf32, #tpu.memory_space<smem>>
      %236 = vector.broadcast %235 : f32 to vector<2x256xf32>
      %237 = arith.mulf %236, %234 : vector<2x256xf32>
      %238 = arith.addf %206, %237 : vector<2x256xf32>
      %c50 = arith.constant 50 : index
      %239 = memref.load %arg2[%c50] : memref<98xf32, #tpu.memory_space<smem>>
      %240 = vector.broadcast %239 : f32 to vector<2x256xf32>
      %241 = arith.mulf %240, %234 : vector<2x256xf32>
      %242 = arith.addf %210, %241 : vector<2x256xf32>
      %c51 = arith.constant 51 : index
      %243 = memref.load %arg2[%c51] : memref<98xf32, #tpu.memory_space<smem>>
      %244 = vector.broadcast %243 : f32 to vector<2x256xf32>
      %245 = arith.mulf %244, %234 : vector<2x256xf32>
      %246 = arith.addf %214, %245 : vector<2x256xf32>
      %c52 = arith.constant 52 : index
      %247 = memref.load %arg2[%c52] : memref<98xf32, #tpu.memory_space<smem>>
      %248 = vector.broadcast %247 : f32 to vector<2x256xf32>
      %249 = arith.mulf %248, %234 : vector<2x256xf32>
      %250 = arith.addf %218, %249 : vector<2x256xf32>
      %c53 = arith.constant 53 : index
      %251 = memref.load %arg2[%c53] : memref<98xf32, #tpu.memory_space<smem>>
      %252 = vector.broadcast %251 : f32 to vector<2x256xf32>
      %253 = arith.mulf %252, %234 : vector<2x256xf32>
      %254 = arith.addf %222, %253 : vector<2x256xf32>
      %c54 = arith.constant 54 : index
      %255 = memref.load %arg2[%c54] : memref<98xf32, #tpu.memory_space<smem>>
      %256 = vector.broadcast %255 : f32 to vector<2x256xf32>
      %257 = arith.mulf %256, %234 : vector<2x256xf32>
      %258 = arith.addf %226, %257 : vector<2x256xf32>
      %c55 = arith.constant 55 : index
      %259 = memref.load %arg2[%c55] : memref<98xf32, #tpu.memory_space<smem>>
      %260 = vector.broadcast %259 : f32 to vector<2x256xf32>
      %261 = arith.mulf %260, %234 : vector<2x256xf32>
      %262 = arith.addf %230, %261 : vector<2x256xf32>
      %c32_i32_22 = arith.constant 32 : i32
      %263 = tpu.dynamic_rotate %16 by %c32_i32_22 dim 1 : vector<2x256xf32>, i32 -> vector<2x256xf32>
      %264 = vector.extract_strided_slice %17 {offsets = [1, 0], sizes = [1, 256], strides = [1, 1]} : vector<14x256xf32> to vector<1x256xf32>
      %265 = vector.broadcast %264 : vector<1x256xf32> to vector<2x256xf32>
      %266 = arith.mulf %263, %265 : vector<2x256xf32>
      %c56 = arith.constant 56 : index
      %267 = memref.load %arg2[%c56] : memref<98xf32, #tpu.memory_space<smem>>
      %268 = vector.broadcast %267 : f32 to vector<2x256xf32>
      %269 = arith.mulf %268, %266 : vector<2x256xf32>
      %270 = arith.addf %238, %269 : vector<2x256xf32>
      %c57 = arith.constant 57 : index
      %271 = memref.load %arg2[%c57] : memref<98xf32, #tpu.memory_space<smem>>
      %272 = vector.broadcast %271 : f32 to vector<2x256xf32>
      %273 = arith.mulf %272, %266 : vector<2x256xf32>
      %274 = arith.addf %242, %273 : vector<2x256xf32>
      %c58 = arith.constant 58 : index
      %275 = memref.load %arg2[%c58] : memref<98xf32, #tpu.memory_space<smem>>
      %276 = vector.broadcast %275 : f32 to vector<2x256xf32>
      %277 = arith.mulf %276, %266 : vector<2x256xf32>
      %278 = arith.addf %246, %277 : vector<2x256xf32>
      %c59 = arith.constant 59 : index
      %279 = memref.load %arg2[%c59] : memref<98xf32, #tpu.memory_space<smem>>
      %280 = vector.broadcast %279 : f32 to vector<2x256xf32>
      %281 = arith.mulf %280, %266 : vector<2x256xf32>
      %282 = arith.addf %250, %281 : vector<2x256xf32>
      %c60 = arith.constant 60 : index
      %283 = memref.load %arg2[%c60] : memref<98xf32, #tpu.memory_space<smem>>
      %284 = vector.broadcast %283 : f32 to vector<2x256xf32>
      %285 = arith.mulf %284, %266 : vector<2x256xf32>
      %286 = arith.addf %254, %285 : vector<2x256xf32>
      %c61 = arith.constant 61 : index
      %287 = memref.load %arg2[%c61] : memref<98xf32, #tpu.memory_space<smem>>
      %288 = vector.broadcast %287 : f32 to vector<2x256xf32>
      %289 = arith.mulf %288, %266 : vector<2x256xf32>
      %290 = arith.addf %258, %289 : vector<2x256xf32>
      %c62 = arith.constant 62 : index
      %291 = memref.load %arg2[%c62] : memref<98xf32, #tpu.memory_space<smem>>
      %292 = vector.broadcast %291 : f32 to vector<2x256xf32>
      %293 = arith.mulf %292, %266 : vector<2x256xf32>
      %294 = arith.addf %262, %293 : vector<2x256xf32>
      %c16_i32_23 = arith.constant 16 : i32
      %295 = tpu.dynamic_rotate %16 by %c16_i32_23 dim 1 : vector<2x256xf32>, i32 -> vector<2x256xf32>
      %296 = vector.extract_strided_slice %17 {offsets = [2, 0], sizes = [1, 256], strides = [1, 1]} : vector<14x256xf32> to vector<1x256xf32>
      %297 = vector.broadcast %296 : vector<1x256xf32> to vector<2x256xf32>
      %298 = arith.mulf %295, %297 : vector<2x256xf32>
      %c63 = arith.constant 63 : index
      %299 = memref.load %arg2[%c63] : memref<98xf32, #tpu.memory_space<smem>>
      %300 = vector.broadcast %299 : f32 to vector<2x256xf32>
      %301 = arith.mulf %300, %298 : vector<2x256xf32>
      %302 = arith.addf %270, %301 : vector<2x256xf32>
      %c64 = arith.constant 64 : index
      %303 = memref.load %arg2[%c64] : memref<98xf32, #tpu.memory_space<smem>>
      %304 = vector.broadcast %303 : f32 to vector<2x256xf32>
      %305 = arith.mulf %304, %298 : vector<2x256xf32>
      %306 = arith.addf %274, %305 : vector<2x256xf32>
      %c65 = arith.constant 65 : index
      %307 = memref.load %arg2[%c65] : memref<98xf32, #tpu.memory_space<smem>>
      %308 = vector.broadcast %307 : f32 to vector<2x256xf32>
      %309 = arith.mulf %308, %298 : vector<2x256xf32>
      %310 = arith.addf %278, %309 : vector<2x256xf32>
      %c66 = arith.constant 66 : index
      %311 = memref.load %arg2[%c66] : memref<98xf32, #tpu.memory_space<smem>>
      %312 = vector.broadcast %311 : f32 to vector<2x256xf32>
      %313 = arith.mulf %312, %298 : vector<2x256xf32>
      %314 = arith.addf %282, %313 : vector<2x256xf32>
      %c67 = arith.constant 67 : index
      %315 = memref.load %arg2[%c67] : memref<98xf32, #tpu.memory_space<smem>>
      %316 = vector.broadcast %315 : f32 to vector<2x256xf32>
      %317 = arith.mulf %316, %298 : vector<2x256xf32>
      %318 = arith.addf %286, %317 : vector<2x256xf32>
      %c68 = arith.constant 68 : index
      %319 = memref.load %arg2[%c68] : memref<98xf32, #tpu.memory_space<smem>>
      %320 = vector.broadcast %319 : f32 to vector<2x256xf32>
      %321 = arith.mulf %320, %298 : vector<2x256xf32>
      %322 = arith.addf %290, %321 : vector<2x256xf32>
      %c69 = arith.constant 69 : index
      %323 = memref.load %arg2[%c69] : memref<98xf32, #tpu.memory_space<smem>>
      %324 = vector.broadcast %323 : f32 to vector<2x256xf32>
      %325 = arith.mulf %324, %298 : vector<2x256xf32>
      %326 = arith.addf %294, %325 : vector<2x256xf32>
      %c70 = arith.constant 70 : index
      %327 = memref.load %arg2[%c70] : memref<98xf32, #tpu.memory_space<smem>>
      %328 = vector.broadcast %327 : f32 to vector<2x256xf32>
      %329 = arith.mulf %328, %16 : vector<2x256xf32>
      %330 = arith.addf %302, %329 : vector<2x256xf32>
      %c71 = arith.constant 71 : index
      %331 = memref.load %arg2[%c71] : memref<98xf32, #tpu.memory_space<smem>>
      %332 = vector.broadcast %331 : f32 to vector<2x256xf32>
      %333 = arith.mulf %332, %16 : vector<2x256xf32>
      %334 = arith.addf %306, %333 : vector<2x256xf32>
      %c72 = arith.constant 72 : index
      %335 = memref.load %arg2[%c72] : memref<98xf32, #tpu.memory_space<smem>>
      %336 = vector.broadcast %335 : f32 to vector<2x256xf32>
      %337 = arith.mulf %336, %16 : vector<2x256xf32>
      %338 = arith.addf %310, %337 : vector<2x256xf32>
      %c73 = arith.constant 73 : index
      %339 = memref.load %arg2[%c73] : memref<98xf32, #tpu.memory_space<smem>>
      %340 = vector.broadcast %339 : f32 to vector<2x256xf32>
      %341 = arith.mulf %340, %16 : vector<2x256xf32>
      %342 = arith.addf %314, %341 : vector<2x256xf32>
      %c74 = arith.constant 74 : index
      %343 = memref.load %arg2[%c74] : memref<98xf32, #tpu.memory_space<smem>>
      %344 = vector.broadcast %343 : f32 to vector<2x256xf32>
      %345 = arith.mulf %344, %16 : vector<2x256xf32>
      %346 = arith.addf %318, %345 : vector<2x256xf32>
      %c75 = arith.constant 75 : index
      %347 = memref.load %arg2[%c75] : memref<98xf32, #tpu.memory_space<smem>>
      %348 = vector.broadcast %347 : f32 to vector<2x256xf32>
      %349 = arith.mulf %348, %16 : vector<2x256xf32>
      %350 = arith.addf %322, %349 : vector<2x256xf32>
      %c76 = arith.constant 76 : index
      %351 = memref.load %arg2[%c76] : memref<98xf32, #tpu.memory_space<smem>>
      %352 = vector.broadcast %351 : f32 to vector<2x256xf32>
      %353 = arith.mulf %352, %16 : vector<2x256xf32>
      %354 = arith.addf %326, %353 : vector<2x256xf32>
      %c240_i32_24 = arith.constant 240 : i32
      %355 = tpu.dynamic_rotate %16 by %c240_i32_24 dim 1 : vector<2x256xf32>, i32 -> vector<2x256xf32>
      %356 = vector.extract_strided_slice %17 {offsets = [4, 0], sizes = [1, 256], strides = [1, 1]} : vector<14x256xf32> to vector<1x256xf32>
      %357 = vector.broadcast %356 : vector<1x256xf32> to vector<2x256xf32>
      %358 = arith.mulf %355, %357 : vector<2x256xf32>
      %c77 = arith.constant 77 : index
      %359 = memref.load %arg2[%c77] : memref<98xf32, #tpu.memory_space<smem>>
      %360 = vector.broadcast %359 : f32 to vector<2x256xf32>
      %361 = arith.mulf %360, %358 : vector<2x256xf32>
      %362 = arith.addf %330, %361 : vector<2x256xf32>
      %c78 = arith.constant 78 : index
      %363 = memref.load %arg2[%c78] : memref<98xf32, #tpu.memory_space<smem>>
      %364 = vector.broadcast %363 : f32 to vector<2x256xf32>
      %365 = arith.mulf %364, %358 : vector<2x256xf32>
      %366 = arith.addf %334, %365 : vector<2x256xf32>
      %c79 = arith.constant 79 : index
      %367 = memref.load %arg2[%c79] : memref<98xf32, #tpu.memory_space<smem>>
      %368 = vector.broadcast %367 : f32 to vector<2x256xf32>
      %369 = arith.mulf %368, %358 : vector<2x256xf32>
      %370 = arith.addf %338, %369 : vector<2x256xf32>
      %c80 = arith.constant 80 : index
      %371 = memref.load %arg2[%c80] : memref<98xf32, #tpu.memory_space<smem>>
      %372 = vector.broadcast %371 : f32 to vector<2x256xf32>
      %373 = arith.mulf %372, %358 : vector<2x256xf32>
      %374 = arith.addf %342, %373 : vector<2x256xf32>
      %c81 = arith.constant 81 : index
      %375 = memref.load %arg2[%c81] : memref<98xf32, #tpu.memory_space<smem>>
      %376 = vector.broadcast %375 : f32 to vector<2x256xf32>
      %377 = arith.mulf %376, %358 : vector<2x256xf32>
      %378 = arith.addf %346, %377 : vector<2x256xf32>
      %c82 = arith.constant 82 : index
      %379 = memref.load %arg2[%c82] : memref<98xf32, #tpu.memory_space<smem>>
      %380 = vector.broadcast %379 : f32 to vector<2x256xf32>
      %381 = arith.mulf %380, %358 : vector<2x256xf32>
      %382 = arith.addf %350, %381 : vector<2x256xf32>
      %c83 = arith.constant 83 : index
      %383 = memref.load %arg2[%c83] : memref<98xf32, #tpu.memory_space<smem>>
      %384 = vector.broadcast %383 : f32 to vector<2x256xf32>
      %385 = arith.mulf %384, %358 : vector<2x256xf32>
      %386 = arith.addf %354, %385 : vector<2x256xf32>
      %c224_i32_25 = arith.constant 224 : i32
      %387 = tpu.dynamic_rotate %16 by %c224_i32_25 dim 1 : vector<2x256xf32>, i32 -> vector<2x256xf32>
      %388 = vector.extract_strided_slice %17 {offsets = [5, 0], sizes = [1, 256], strides = [1, 1]} : vector<14x256xf32> to vector<1x256xf32>
      %389 = vector.broadcast %388 : vector<1x256xf32> to vector<2x256xf32>
      %390 = arith.mulf %387, %389 : vector<2x256xf32>
      %c84 = arith.constant 84 : index
      %391 = memref.load %arg2[%c84] : memref<98xf32, #tpu.memory_space<smem>>
      %392 = vector.broadcast %391 : f32 to vector<2x256xf32>
      %393 = arith.mulf %392, %390 : vector<2x256xf32>
      %394 = arith.addf %362, %393 : vector<2x256xf32>
      %c85 = arith.constant 85 : index
      %395 = memref.load %arg2[%c85] : memref<98xf32, #tpu.memory_space<smem>>
      %396 = vector.broadcast %395 : f32 to vector<2x256xf32>
      %397 = arith.mulf %396, %390 : vector<2x256xf32>
      %398 = arith.addf %366, %397 : vector<2x256xf32>
      %c86 = arith.constant 86 : index
      %399 = memref.load %arg2[%c86] : memref<98xf32, #tpu.memory_space<smem>>
      %400 = vector.broadcast %399 : f32 to vector<2x256xf32>
      %401 = arith.mulf %400, %390 : vector<2x256xf32>
      %402 = arith.addf %370, %401 : vector<2x256xf32>
      %c87 = arith.constant 87 : index
      %403 = memref.load %arg2[%c87] : memref<98xf32, #tpu.memory_space<smem>>
      %404 = vector.broadcast %403 : f32 to vector<2x256xf32>
      %405 = arith.mulf %404, %390 : vector<2x256xf32>
      %406 = arith.addf %374, %405 : vector<2x256xf32>
      %c88 = arith.constant 88 : index
      %407 = memref.load %arg2[%c88] : memref<98xf32, #tpu.memory_space<smem>>
      %408 = vector.broadcast %407 : f32 to vector<2x256xf32>
      %409 = arith.mulf %408, %390 : vector<2x256xf32>
      %410 = arith.addf %378, %409 : vector<2x256xf32>
      %c89 = arith.constant 89 : index
      %411 = memref.load %arg2[%c89] : memref<98xf32, #tpu.memory_space<smem>>
      %412 = vector.broadcast %411 : f32 to vector<2x256xf32>
      %413 = arith.mulf %412, %390 : vector<2x256xf32>
      %414 = arith.addf %382, %413 : vector<2x256xf32>
      %c90 = arith.constant 90 : index
      %415 = memref.load %arg2[%c90] : memref<98xf32, #tpu.memory_space<smem>>
      %416 = vector.broadcast %415 : f32 to vector<2x256xf32>
      %417 = arith.mulf %416, %390 : vector<2x256xf32>
      %418 = arith.addf %386, %417 : vector<2x256xf32>
      %c208_i32_26 = arith.constant 208 : i32
      %419 = tpu.dynamic_rotate %16 by %c208_i32_26 dim 1 : vector<2x256xf32>, i32 -> vector<2x256xf32>
      %420 = vector.extract_strided_slice %17 {offsets = [6, 0], sizes = [1, 256], strides = [1, 1]} : vector<14x256xf32> to vector<1x256xf32>
      %421 = vector.broadcast %420 : vector<1x256xf32> to vector<2x256xf32>
      %422 = arith.mulf %419, %421 : vector<2x256xf32>
      %c91 = arith.constant 91 : index
      %423 = memref.load %arg2[%c91] : memref<98xf32, #tpu.memory_space<smem>>
      %424 = vector.broadcast %423 : f32 to vector<2x256xf32>
      %425 = arith.mulf %424, %422 : vector<2x256xf32>
      %426 = arith.addf %394, %425 : vector<2x256xf32>
      %c92 = arith.constant 92 : index
      %427 = memref.load %arg2[%c92] : memref<98xf32, #tpu.memory_space<smem>>
      %428 = vector.broadcast %427 : f32 to vector<2x256xf32>
      %429 = arith.mulf %428, %422 : vector<2x256xf32>
      %430 = arith.addf %398, %429 : vector<2x256xf32>
      %c93 = arith.constant 93 : index
      %431 = memref.load %arg2[%c93] : memref<98xf32, #tpu.memory_space<smem>>
      %432 = vector.broadcast %431 : f32 to vector<2x256xf32>
      %433 = arith.mulf %432, %422 : vector<2x256xf32>
      %434 = arith.addf %402, %433 : vector<2x256xf32>
      %c94 = arith.constant 94 : index
      %435 = memref.load %arg2[%c94] : memref<98xf32, #tpu.memory_space<smem>>
      %436 = vector.broadcast %435 : f32 to vector<2x256xf32>
      %437 = arith.mulf %436, %422 : vector<2x256xf32>
      %438 = arith.addf %406, %437 : vector<2x256xf32>
      %c95 = arith.constant 95 : index
      %439 = memref.load %arg2[%c95] : memref<98xf32, #tpu.memory_space<smem>>
      %440 = vector.broadcast %439 : f32 to vector<2x256xf32>
      %441 = arith.mulf %440, %422 : vector<2x256xf32>
      %442 = arith.addf %410, %441 : vector<2x256xf32>
      %c96 = arith.constant 96 : index
      %443 = memref.load %arg2[%c96] : memref<98xf32, #tpu.memory_space<smem>>
      %444 = vector.broadcast %443 : f32 to vector<2x256xf32>
      %445 = arith.mulf %444, %422 : vector<2x256xf32>
      %446 = arith.addf %414, %445 : vector<2x256xf32>
      %c97 = arith.constant 97 : index
      %447 = memref.load %arg2[%c97] : memref<98xf32, #tpu.memory_space<smem>>
      %448 = vector.broadcast %447 : f32 to vector<2x256xf32>
      %449 = arith.mulf %448, %422 : vector<2x256xf32>
      %450 = arith.addf %418, %449 : vector<2x256xf32>
      %c3_i32 = arith.constant 3 : i32
      %451 = tpu.dynamic_rotate %426 by %c3_i32 dim 1 : vector<2x256xf32>, i32 -> vector<2x256xf32>
      %452 = vector.extract_strided_slice %17 {offsets = [7, 0], sizes = [1, 256], strides = [1, 1]} : vector<14x256xf32> to vector<1x256xf32>
      %453 = vector.broadcast %452 : vector<1x256xf32> to vector<2x256xf32>
      %454 = arith.mulf %451, %453 : vector<2x256xf32>
      %c2_i32 = arith.constant 2 : i32
      %455 = tpu.dynamic_rotate %430 by %c2_i32 dim 1 : vector<2x256xf32>, i32 -> vector<2x256xf32>
      %456 = vector.extract_strided_slice %17 {offsets = [8, 0], sizes = [1, 256], strides = [1, 1]} : vector<14x256xf32> to vector<1x256xf32>
      %457 = vector.broadcast %456 : vector<1x256xf32> to vector<2x256xf32>
      %458 = arith.mulf %455, %457 : vector<2x256xf32>
      %459 = arith.addf %454, %458 : vector<2x256xf32>
      %c1_i32 = arith.constant 1 : i32
      %460 = tpu.dynamic_rotate %434 by %c1_i32 dim 1 : vector<2x256xf32>, i32 -> vector<2x256xf32>
      %461 = vector.extract_strided_slice %17 {offsets = [9, 0], sizes = [1, 256], strides = [1, 1]} : vector<14x256xf32> to vector<1x256xf32>
      %462 = vector.broadcast %461 : vector<1x256xf32> to vector<2x256xf32>
      %463 = arith.mulf %460, %462 : vector<2x256xf32>
      %464 = arith.addf %459, %463 : vector<2x256xf32>
      %465 = arith.addf %464, %438 : vector<2x256xf32>
      %c255_i32 = arith.constant 255 : i32
      %466 = tpu.dynamic_rotate %442 by %c255_i32 dim 1 : vector<2x256xf32>, i32 -> vector<2x256xf32>
      %467 = vector.extract_strided_slice %17 {offsets = [11, 0], sizes = [1, 256], strides = [1, 1]} : vector<14x256xf32> to vector<1x256xf32>
      %468 = vector.broadcast %467 : vector<1x256xf32> to vector<2x256xf32>
      %469 = arith.mulf %466, %468 : vector<2x256xf32>
      %470 = arith.addf %465, %469 : vector<2x256xf32>
      %c254_i32 = arith.constant 254 : i32
      %471 = tpu.dynamic_rotate %446 by %c254_i32 dim 1 : vector<2x256xf32>, i32 -> vector<2x256xf32>
      %472 = vector.extract_strided_slice %17 {offsets = [12, 0], sizes = [1, 256], strides = [1, 1]} : vector<14x256xf32> to vector<1x256xf32>
      %473 = vector.broadcast %472 : vector<1x256xf32> to vector<2x256xf32>
      %474 = arith.mulf %471, %473 : vector<2x256xf32>
      %475 = arith.addf %470, %474 : vector<2x256xf32>
      %c253_i32 = arith.constant 253 : i32
      %476 = tpu.dynamic_rotate %450 by %c253_i32 dim 1 : vector<2x256xf32>, i32 -> vector<2x256xf32>
      %477 = vector.extract_strided_slice %17 {offsets = [13, 0], sizes = [1, 256], strides = [1, 1]} : vector<14x256xf32> to vector<1x256xf32>
      %478 = vector.broadcast %477 : vector<1x256xf32> to vector<2x256xf32>
      %479 = arith.mulf %476, %478 : vector<2x256xf32>
      %480 = arith.addf %475, %479 : vector<2x256xf32>
      %481 = arith.negf %480 : vector<2x256xf32>
      %482 = math.exp %481 : vector<2x256xf32>
      %cst_27 = arith.constant 1.000000e+00 : f32
      %483 = vector.broadcast %cst_27 : f32 to vector<2x256xf32>
      %484 = arith.addf %483, %482 : vector<2x256xf32>
      %485 = arith.divf %483, %484 : vector<2x256xf32>
      %c0_28 = arith.constant 0 : index
      %c0_29 = arith.constant 0 : index
      %486 = vector.load %arg5[%c0_28, %c0_29] : memref<2x256xf32, #tpu.memory_space<vmem>>, vector<2x256xf32>
      tpu.vector_store %arg5[%c0_28, %c0_29], %485 {strides = array<i32>} : memref<2x256xf32, #tpu.memory_space<vmem>>, vector<2x256xf32>,
    } else {
    }
    return
  }
  func.func @transform_0(%arg0: i32, %arg1: i32) -> i32 {
    %c0_i32 = arith.constant 0 : i32
    %c0_i32_0 = arith.constant 0 : i32
    return %c0_i32 : i32
  }
  func.func @transform_1(%arg0: i32, %arg1: i32) -> (i32, i32) {
    %c0_i32 = arith.constant 0 : i32
    %c0_i32_0 = arith.constant 0 : i32
    %c0_i32_1 = arith.constant 0 : i32
    return %c0_i32, %c0_i32_0 : i32, i32
  }
  func.func @transform_2(%arg0: i32, %arg1: i32) -> (i32, i32, i32) {
    %c0_i32 = arith.constant 0 : i32
    %c0_i32_0 = arith.constant 0 : i32
    return %arg0, %arg1, %c0_i32 : i32, i32, i32
  }
  func.func @transform_3(%arg0: i32, %arg1: i32) -> (i32, i32) {
    %c0_i32 = arith.constant 0 : i32
    %c0_i32_0 = arith.constant 0 : i32
    return %arg0, %c0_i32 : i32, i32
  }
}

</mosaic_0001>

<llo_original>
// kernel: tpu_custom_call.1
$region0: #{tpu_custom_call.1}
  #allocation0 [shape = 'u32[]', space=smem, size = 0x4, offset = 0x4, fixed_abs, tag = 'smem constant byte address 0x4 - core index']
  #allocation1 [shape = 'u32[144,128]{1,0:T(1,128)}', space=vmem, size = 0x12000, scoped, tag = 'internal scratch']
  #allocation2 [shape = 'f32[2,256]{1,0:T(2,128)}', space=vmem, size = 0x800, scoped, tag = 'scratch operand']
  #allocation3 [shape = 'f32[2,256]{1,0:T(2,128)}', space=vmem, size = 0x800, scoped, tag = 'scratch operand']
  %s0 = inlined_call_operand.hbm [shape: f32[98], index: 0, kind: input, shape index: {}]
  %s1 = inlined_call_operand.hbm [shape: f32[14,256], index: 1, kind: input, shape index: {}]
  %s2 = inlined_call_operand.hbm [shape: f32[2,4,256], index: 2, kind: input, shape index: {}]
  %s3 = inlined_call_operand.hbm [shape: f32[2,256], index: 3, kind: output, shape index: {}]
  %s4 = sld [smem:[#allocation0]]
  $region42: #{tpu_custom_call.1} parent=0
    _
  %s6 = ssub.s32 1, %s4
  %s7 = scalar_select 0, %s6, %s4
  $region1: #{tpu_custom_call.1} parent=0
    #allocation4 [shape = 'u8[512]{0}', space=smem, size = 0x200, scoped, tag = 'input window, operand 0, single buffered']
    #allocation5 [shape = 's32[1]{0}', space=sflag, size = 0x4, scoped, tag = 'scoped memory for tpu_custom_call.1']
    #allocation6 [shape = 's32[1]{0}', space=sflag, size = 0x4, scoped, tag = 'scoped memory for tpu_custom_call.1']
    #allocation7 [shape = 's32[1]{0}', space=sflag, size = 0x4, scoped, tag = 'scoped memory for tpu_custom_call.1']
    #allocation8 [shape = 'u8[16384]{0}', space=vmem, size = 0x4000, scoped, tag = 'input window, operand 1, single buffered']
    #allocation9 [shape = 'u8[8192]{0}', space=vmem, size = 0x2000, scoped, tag = 'input window, operand 2, single buffered']
    #allocation10 [shape = 's32[1]{0}', space=sflag, size = 0x4, scoped, tag = 'scoped memory for tpu_custom_call.1']
    #allocation11 [shape = 'u8[2048]{0}', space=vmem, size = 0x800, scoped, tag = 'output window, operand 0, single buffered']
    %8 = vsyncpa [#allocation7], 0
    %9 = vsyncpa [#allocation5], 0
    %10 = vsyncpa [#allocation10], 0
    %11 = vsyncpa [#allocation6], 0
    // Predicated region
    $region2: #{tpu_custom_call.1} parent=1 // pred_check
      _
    $region3: #{tpu_custom_call.1} parent=1 // pred_check_branch
      %13 = sbr.rel (0) target = $region5
    $region4: #{tpu_custom_call.1} parent=1 // pred_region
      %s15 = ssub.s32 16, 16
      %16 = vsyncadd [#allocation7], %s15
      %19 = dma.hbm_to_smem %s0, 16, [#allocation4], [#allocation7]
    $region5: #{tpu_custom_call.1} parent=1 // pred_fallthru
      _
    // Predicated region
    $region6: #{tpu_custom_call.1} parent=1 // pred_check
      _
    $region7: #{tpu_custom_call.1} parent=1 // pred_check_branch
      %21 = sbr.rel (0) target = $region9
    $region8: #{tpu_custom_call.1} parent=1 // pred_region
      %s23 = ssub.s32 512, 512
      %24 = vsyncadd [#allocation5], %s23
      %s25 = sshll.u32 [#allocation8], 4
      %s26 = int_to_ptr.vmem [resolvable:$true] %s25
      %31 = dma.hbm_to_vmem [thread:$0]  %s1, 512, %s26, [#allocation5], 256, 256, 16
    $region9: #{tpu_custom_call.1} parent=1 // pred_fallthru
      _
    // Predicated region
    $region10: #{tpu_custom_call.1} parent=1 // pred_check
      _
    $region11: #{tpu_custom_call.1} parent=1 // pred_check_branch
      %33 = sbr.rel (0) target = $region13
    $region12: #{tpu_custom_call.1} parent=1 // pred_region
      %s35 = ssub.s32 256, 256
      %36 = vsyncadd [#allocation10], %s35
      %s37 = sshll.u32 [#allocation9], 4
      %s38 = int_to_ptr.vmem [resolvable:$true] %s37
      %43 = dma.hbm_to_vmem [thread:$0]  %s2, 256, %s38, [#allocation10], 128, 128, 8
    $region13: #{tpu_custom_call.1} parent=1 // pred_fallthru
      _
    // Predicated region
    $region14: #{tpu_custom_call.1} parent=1 // pred_check
      _
    $region15: #{tpu_custom_call.1} parent=1 // pred_check_branch
      %45 = sbr.rel (0) target = $region17
    $region16: #{tpu_custom_call.1} parent=1 // pred_region
      %46 = dma.done [#allocation7], 16
    $region17: #{tpu_custom_call.1} parent=1 // pred_fallthru
      _
    // Predicated region
    $region18: #{tpu_custom_call.1} parent=1 // pred_check
      _
    $region19: #{tpu_custom_call.1} parent=1 // pred_check_branch
      %48 = sbr.rel (0) target = $region21
    $region20: #{tpu_custom_call.1} parent=1 // pred_region
      %49 = dma.done [#allocation5], 512
    $region21: #{tpu_custom_call.1} parent=1 // pred_fallthru
      _
    // Predicated region
    $region22: #{tpu_custom_call.1} parent=1 // pred_check
      _
    $region23: #{tpu_custom_call.1} parent=1 // pred_check_branch
      %51 = sbr.rel (0) target = $region25
    $region24: #{tpu_custom_call.1} parent=1 // pred_region
      %52 = dma.done [#allocation10], 256
    $region25: #{tpu_custom_call.1} parent=1 // pred_fallthru
      _
    %53 = sfence
    %p54 = scmp.eq.s32.totalorder 0, 0
    // Predicated region
    $region26: #{tpu_custom_call.1} parent=1 // pred_check
      %p55 = pneg %p54
    $region27: #{tpu_custom_call.1} parent=1 // pred_check_branch
      %57 = sbr.rel (%p55) target = $region29
    $region28: #{tpu_custom_call.1} parent=1 // pred_region
      %58 = vst [vmem:[#allocation2] sm:$0xf] 0.0
      %59 = vst [vmem:[#allocation3] sm:$0xf] -inf
    $region29: #{tpu_custom_call.1} parent=1 // pred_fallthru
      _
    %v60 = vld [vmem:[#allocation9] sm:$0xff]
    %v61 = vld [vmem:[#allocation9 + $0x8] sm:$0xff]
    %v62 = vld [vmem:[#allocation2] sm:$0xf]
    %v65 = vcombine.high %v60, %v60
    %v66 = vcombine.high %v61, %v61
    %vm69 = vcmask 1043456
    %v70 = vsel %vm69, %v60, 0.0
    %v71 = vrot.slane %v70, 4
    %v72 = vadd.f32 %v70, %v71
    %v73 = vrot.slane %v72, 2
    %v74 = vadd.f32 %v72, %v73
    %v75 = vrot.slane %v74, 1
    %v76 = vadd.f32 %v74, %v75
    %v77 = vsel %vm69, %v65, 0.0
    %v78 = vrot.slane %v77, 4
    %v79 = vadd.f32 %v77, %v78
    %v80 = vrot.slane %v79, 2
    %v81 = vadd.f32 %v79, %v80
    %v82 = vrot.slane %v81, 1
    %v83 = vadd.f32 %v81, %v82
    %v84 = vsel %vm69, %v61, 0.0
    %v85 = vrot.slane %v84, 4
    %v86 = vadd.f32 %v84, %v85
    %v87 = vrot.slane %v86, 2
    %v88 = vadd.f32 %v86, %v87
    %v89 = vrot.slane %v88, 1
    %v90 = vadd.f32 %v88, %v89
    %v91 = vsel %vm69, %v66, 0.0
    %v92 = vrot.slane %v91, 4
    %v93 = vadd.f32 %v91, %v92
    %v94 = vrot.slane %v93, 2
    %v95 = vadd.f32 %v93, %v94
    %v96 = vrot.slane %v95, 1
    %v97 = vadd.f32 %v95, %v96
    %v102 = vcombine.low %v76, %v83
    %v104 = vunpack.c.l.s4 1983009808
    %v105 = vunpack.c.0.s8 %v104
    %v106 = vlaneseq
    %v107 = vshrl.u32 %v106, 7
    %v108 = vsub.s32 %v105, %v107
    %v109 = vrot.slane %v102, %v108
    %v110 = vcombine.low %v90, %v97
    %v112 = vunpack.c.l.s4 1983009808
    %v113 = vunpack.c.0.s8 %v112
    %v114 = vlaneseq
    %v115 = vshrl.u32 %v114, 7
    %v116 = vsub.s32 %v113, %v115
    %v117 = vrot.slane %v110, %v116
    %vm118 = vcmask 1044484
    %v119 = vsel %vm118, %v109, %v109
    %vm120 = vcmask 1046534
    %v121 = vsel %vm120, %v109, %v119
    %v122 = vrot.slane %v117, 7
    %vm123 = vcmask 1041409
    %v124 = vsel %vm123, %v122, %v121
    %vm125 = vcmask 1043459
    %v126 = vsel %vm125, %v122, %v124
    %vm127 = vcmask 1045509
    %v128 = vsel %vm127, %v122, %v126
    %vm129 = vcmask 1047559
    %v130 = vsel %vm129, %v122, %v128
    %v132 = vadd.f32 %v62, %v130
    %133 = vst [vmem:[#allocation2] sm:$0xf] %v132
    %v134 = vld [vmem:[#allocation3] sm:$0xf]
    %v135 = vsel %vm69, %v60, -inf
    %v136 = vrot.slane %v135, 4
    %v137 = vmax.f32 %v135, %v136
    %v138 = vrot.slane %v137, 2
    %v139 = vmax.f32 %v137, %v138
    %v140 = vrot.slane %v139, 1
    %v141 = vmax.f32 %v139, %v140
    %v142 = vsel %vm69, %v65, -inf
    %v143 = vrot.slane %v142, 4
    %v144 = vmax.f32 %v142, %v143
    %v145 = vrot.slane %v144, 2
    %v146 = vmax.f32 %v144, %v145
    %v147 = vrot.slane %v146, 1
    %v148 = vmax.f32 %v146, %v147
    %v149 = vsel %vm69, %v61, -inf
    %v150 = vrot.slane %v149, 4
    %v151 = vmax.f32 %v149, %v150
    %v152 = vrot.slane %v151, 2
    %v153 = vmax.f32 %v151, %v152
    %v154 = vrot.slane %v153, 1
    %v155 = vmax.f32 %v153, %v154
    %v156 = vsel %vm69, %v66, -inf
    %v157 = vrot.slane %v156, 4
    %v158 = vmax.f32 %v156, %v157
    %v159 = vrot.slane %v158, 2
    %v160 = vmax.f32 %v158, %v159
    %v161 = vrot.slane %v160, 1
    %v162 = vmax.f32 %v160, %v161
    %v167 = vcombine.low %v141, %v148
    %v169 = vunpack.c.l.s4 1983009808
    %v170 = vunpack.c.0.s8 %v169
    %v171 = vlaneseq
    %v172 = vshrl.u32 %v171, 7
    %v173 = vsub.s32 %v170, %v172
    %v174 = vrot.slane %v167, %v173
    %v175 = vcombine.low %v155, %v162
    %v177 = vunpack.c.l.s4 1983009808
    %v178 = vunpack.c.0.s8 %v177
    %v179 = vlaneseq
    %v180 = vshrl.u32 %v179, 7
    %v181 = vsub.s32 %v178, %v180
    %v182 = vrot.slane %v175, %v181
    %v183 = vsel %vm118, %v174, %v174
    %v184 = vsel %vm120, %v174, %v183
    %v185 = vrot.slane %v182, 7
    %v186 = vsel %vm123, %v185, %v184
    %v187 = vsel %vm125, %v185, %v186
    %v188 = vsel %vm127, %v185, %v187
    %v189 = vsel %vm129, %v185, %v188
    %v191 = vmax.f32 %v134, %v189
    %192 = vst [vmem:[#allocation3] sm:$0xf] %v191
    // Predicated region
    $region30: #{tpu_custom_call.1} parent=1 // pred_check
      %p193 = pneg %p54
    $region31: #{tpu_custom_call.1} parent=1 // pred_check_branch
      %195 = sbr.rel (%p193) target = $region33
    $region32: #{tpu_custom_call.1} parent=1 // pred_region
      %v196 = vld [vmem:[#allocation2] sm:$0xf]
      %v197 = vld [vmem:[#allocation3] sm:$0xf]
      %v198 = vld [vmem:[#allocation8] sm:$0xff]
      %v199 = vld [vmem:[#allocation8 + $0x8] sm:$0xff]
      %v200 = vld [vmem:[#allocation8 + $0x10] sm:$0x3f]
      %v201 = vld [vmem:[#allocation8 + $0x18] sm:$0x3f]
      %v204 = vunpack.c.l.s4 1983009808
      %v205 = vunpack.c.0.s8 %v204
      %v206 = vlaneseq
      %v207 = vshrl.u32 %v206, 7
      %v208 = vsub.s32 %v205, %v207
      %v209 = vrot.slane %v196, %v208
      %v210 = vcombine.high %v209, %v209
      %213 = vrot.lane.b32.xlu0 %v209, 48
      %v214 = vpop.permute.xlu0 %213
      %215 = vrot.lane.b32.xlu0 %v210, 48
      %v216 = vpop.permute.xlu0 %215
      %v217 = vlaneseq
      %v218 = vand.u32 %v217, 127
      %vm219 = vcmp.lt.s32.totalorder %v218, 48
      %v220 = vsel %vm219, %v214, %v216
      %v221 = vsel %vm219, %v216, %v214
      %v222 = vlaneseq
      %v223 = vshrl.u32 %v222, 7
      %v224 = vsub.s32 0, %v223
      %v225 = vrot.slane %v198, %v224
      %v226 = vlaneseq
      %v227 = vshrl.u32 %v226, 7
      %v228 = vsub.s32 0, %v227
      %v229 = vrot.slane %v199, %v228
      %v230 = vmul.f32 %v221, %v225
      %v231 = vmul.f32 %v220, %v229
      %s232 = sld [smem:[#allocation4]]
      %v233 = vstv %s232
      %v234 = vmul.f32 %v233, %v230
      %v235 = vmul.f32 %v233, %v231
      %s236 = sld [smem:[#allocation4 + $0x1]]
      %v237 = vstv %s236
      %v238 = vmul.f32 %v237, %v230
      %v239 = vmul.f32 %v237, %v231
      %s240 = sld [smem:[#allocation4 + $0x2]]
      %v241 = vstv %s240
      %v242 = vmul.f32 %v241, %v230
      %v243 = vmul.f32 %v241, %v231
      %s244 = sld [smem:[#allocation4 + $0x3]]
      %v245 = vstv %s244
      %v246 = vmul.f32 %v245, %v230
      %v247 = vmul.f32 %v245, %v231
      %s248 = sld [smem:[#allocation4 + $0x4]]
      %v249 = vstv %s248
      %v250 = vmul.f32 %v249, %v230
      %v251 = vmul.f32 %v249, %v231
      %s252 = sld [smem:[#allocation4 + $0x5]]
      %v253 = vstv %s252
      %v254 = vmul.f32 %v253, %v230
      %v255 = vmul.f32 %v253, %v231
      %s256 = sld [smem:[#allocation4 + $0x6]]
      %v257 = vstv %s256
      %v258 = vmul.f32 %v257, %v230
      %v259 = vmul.f32 %v257, %v231
      %260 = vrot.lane.b32.xlu0 %v209, 32
      %v261 = vpop.permute.xlu0 %260
      %262 = vrot.lane.b32.xlu0 %v210, 32
      %v263 = vpop.permute.xlu0 %262
      %vm264 = vcmp.lt.s32.totalorder %v218, 32
      %v265 = vsel %vm264, %v261, %v263
      %v266 = vsel %vm264, %v263, %v261
      %v267 = vlaneseq
      %v268 = vshrl.u32 %v267, 7
      %v269 = vsub.s32 1, %v268
      %v270 = vrot.slane %v198, %v269
      %v271 = vlaneseq
      %v272 = vshrl.u32 %v271, 7
      %v273 = vsub.s32 1, %v272
      %v274 = vrot.slane %v199, %v273
      %v275 = vmul.f32 %v266, %v270
      %v276 = vmul.f32 %v265, %v274
      %s277 = sld [smem:[#allocation4 + $0x7]]
      %v278 = vstv %s277
      %v279 = vmul.f32 %v278, %v275
      %v280 = vmul.f32 %v278, %v276
      %v281 = vadd.f32 %v234, %v279
      %v282 = vadd.f32 %v235, %v280
      %s283 = sld [smem:[#allocation4 + $0x8]]
      %v284 = vstv %s283
      %v285 = vmul.f32 %v284, %v275
      %v286 = vmul.f32 %v284, %v276
      %v287 = vadd.f32 %v238, %v285
      %v288 = vadd.f32 %v239, %v286
      %s289 = sld [smem:[#allocation4 + $0x9]]
      %v290 = vstv %s289
      %v291 = vmul.f32 %v290, %v275
      %v292 = vmul.f32 %v290, %v276
      %v293 = vadd.f32 %v242, %v291
      %v294 = vadd.f32 %v243, %v292
      %s295 = sld [smem:[#allocation4 + $0xa]]
      %v296 = vstv %s295
      %v297 = vmul.f32 %v296, %v275
      %v298 = vmul.f32 %v296, %v276
      %v299 = vadd.f32 %v246, %v297
      %v300 = vadd.f32 %v247, %v298
      %s301 = sld [smem:[#allocation4 + $0xb]]
      %v302 = vstv %s301
      %v303 = vmul.f32 %v302, %v275
      %v304 = vmul.f32 %v302, %v276
      %v305 = vadd.f32 %v250, %v303
      %v306 = vadd.f32 %v251, %v304
      %s307 = sld [smem:[#allocation4 + $0xc]]
      %v308 = vstv %s307
      %v309 = vmul.f32 %v308, %v275
      %v310 = vmul.f32 %v308, %v276
      %v311 = vadd.f32 %v254, %v309
      %v312 = vadd.f32 %v255, %v310
      %s313 = sld [smem:[#allocation4 + $0xd]]
      %v314 = vstv %s313
      %v315 = vmul.f32 %v314, %v275
      %v316 = vmul.f32 %v314, %v276
      %v317 = vadd.f32 %v258, %v315
      %v318 = vadd.f32 %v259, %v316
      %319 = vrot.lane.b32.xlu0 %v209, 16
      %v320 = vpop.permute.xlu0 %319
      %321 = vrot.lane.b32.xlu0 %v210, 16
      %v322 = vpop.permute.xlu0 %321
      %vm323 = vcmp.lt.s32.totalorder %v218, 16
      %v324 = vsel %vm323, %v320, %v322
      %v325 = vsel %vm323, %v322, %v320
      %v326 = vlaneseq
      %v327 = vshrl.u32 %v326, 7
      %v328 = vsub.s32 2, %v327
      %v329 = vrot.slane %v198, %v328
      %v330 = vlaneseq
      %v331 = vshrl.u32 %v330, 7
      %v332 = vsub.s32 2, %v331
      %v333 = vrot.slane %v199, %v332
      %v334 = vmul.f32 %v325, %v329
      %v335 = vmul.f32 %v324, %v333
      %s336 = sld [smem:[#allocation4 + $0xe]]
      %v337 = vstv %s336
      %v338 = vmul.f32 %v337, %v334
      %v339 = vmul.f32 %v337, %v335
      %v340 = vadd.f32 %v281, %v338
      %v341 = vadd.f32 %v282, %v339
      %s342 = sld [smem:[#allocation4 + $0xf]]
      %v343 = vstv %s342
      %v344 = vmul.f32 %v343, %v334
      %v345 = vmul.f32 %v343, %v335
      %v346 = vadd.f32 %v287, %v344
      %v347 = vadd.f32 %v288, %v345
      %s348 = sld [smem:[#allocation4 + $0x10]]
      %v349 = vstv %s348
      %v350 = vmul.f32 %v349, %v334
      %v351 = vmul.f32 %v349, %v335
      %v352 = vadd.f32 %v293, %v350
      %v353 = vadd.f32 %v294, %v351
      %s354 = sld [smem:[#allocation4 + $0x11]]
      %v355 = vstv %s354
      %v356 = vmul.f32 %v355, %v334
      %v357 = vmul.f32 %v355, %v335
      %v358 = vadd.f32 %v299, %v356
      %v359 = vadd.f32 %v300, %v357
      %s360 = sld [smem:[#allocation4 + $0x12]]
      %v361 = vstv %s360
      %v362 = vmul.f32 %v361, %v334
      %v363 = vmul.f32 %v361, %v335
      %v364 = vadd.f32 %v305, %v362
      %v365 = vadd.f32 %v306, %v363
      %s366 = sld [smem:[#allocation4 + $0x13]]
      %v367 = vstv %s366
      %v368 = vmul.f32 %v367, %v334
      %v369 = vmul.f32 %v367, %v335
      %v370 = vadd.f32 %v311, %v368
      %v371 = vadd.f32 %v312, %v369
      %s372 = sld [smem:[#allocation4 + $0x14]]
      %v373 = vstv %s372
      %v374 = vmul.f32 %v373, %v334
      %v375 = vmul.f32 %v373, %v335
      %v376 = vadd.f32 %v317, %v374
      %v377 = vadd.f32 %v318, %v375
      %s378 = sld [smem:[#allocation4 + $0x15]]
      %v379 = vstv %s378
      %v380 = vmul.f32 %v379, %v196
      %v383 = vunpack.c.l.s4 1983009808
      %v384 = vunpack.c.0.s8 %v383
      %v385 = vlaneseq
      %v386 = vshrl.u32 %v385, 7
      %v387 = vsub.s32 %v384, %v386
      %v388 = vrot.slane %v380, %v387
      %v389 = vcombine.high %v388, %v388
      %v392 = vadd.f32 %v340, %v388
      %v393 = vadd.f32 %v341, %v389
      %s394 = sld [smem:[#allocation4 + $0x16]]
      %v395 = vstv %s394
      %v396 = vmul.f32 %v395, %v196
      %v399 = vunpack.c.l.s4 1983009808
      %v400 = vunpack.c.0.s8 %v399
      %v401 = vlaneseq
      %v402 = vshrl.u32 %v401, 7
      %v403 = vsub.s32 %v400, %v402
      %v404 = vrot.slane %v396, %v403
      %v405 = vcombine.high %v404, %v404
      %v408 = vadd.f32 %v346, %v404
      %v409 = vadd.f32 %v347, %v405
      %s410 = sld [smem:[#allocation4 + $0x17]]
      %v411 = vstv %s410
      %v412 = vmul.f32 %v411, %v196
      %v415 = vunpack.c.l.s4 1983009808
      %v416 = vunpack.c.0.s8 %v415
      %v417 = vlaneseq
      %v418 = vshrl.u32 %v417, 7
      %v419 = vsub.s32 %v416, %v418
      %v420 = vrot.slane %v412, %v419
      %v421 = vcombine.high %v420, %v420
      %v424 = vadd.f32 %v352, %v420
      %v425 = vadd.f32 %v353, %v421
      %s426 = sld [smem:[#allocation4 + $0x18]]
      %v427 = vstv %s426
      %v428 = vmul.f32 %v427, %v196
      %v431 = vunpack.c.l.s4 1983009808
      %v432 = vunpack.c.0.s8 %v431
      %v433 = vlaneseq
      %v434 = vshrl.u32 %v433, 7
      %v435 = vsub.s32 %v432, %v434
      %v436 = vrot.slane %v428, %v435
      %v437 = vcombine.high %v436, %v436
      %v440 = vadd.f32 %v358, %v436
      %v441 = vadd.f32 %v359, %v437
      %s442 = sld [smem:[#allocation4 + $0x19]]
      %v443 = vstv %s442
      %v444 = vmul.f32 %v443, %v196
      %v447 = vunpack.c.l.s4 1983009808
      %v448 = vunpack.c.0.s8 %v447
      %v449 = vlaneseq
      %v450 = vshrl.u32 %v449, 7
      %v451 = vsub.s32 %v448, %v450
      %v452 = vrot.slane %v444, %v451
      %v453 = vcombine.high %v452, %v452
      %v456 = vadd.f32 %v364, %v452
      %v457 = vadd.f32 %v365, %v453
      %s458 = sld [smem:[#allocation4 + $0x1a]]
      %v459 = vstv %s458
      %v460 = vmul.f32 %v459, %v196
      %v463 = vunpack.c.l.s4 1983009808
      %v464 = vunpack.c.0.s8 %v463
      %v465 = vlaneseq
      %v466 = vshrl.u32 %v465, 7
      %v467 = vsub.s32 %v464, %v466
      %v468 = vrot.slane %v460, %v467
      %v469 = vcombine.high %v468, %v468
      %v472 = vadd.f32 %v370, %v468
      %v473 = vadd.f32 %v371, %v469
      %s474 = sld [smem:[#allocation4 + $0x1b]]
      %v475 = vstv %s474
      %v476 = vmul.f32 %v475, %v196
      %v479 = vunpack.c.l.s4 1983009808
      %v480 = vunpack.c.0.s8 %v479
      %v481 = vlaneseq
      %v482 = vshrl.u32 %v481, 7
      %v483 = vsub.s32 %v480, %v482
      %v484 = vrot.slane %v476, %v483
      %v485 = vcombine.high %v484, %v484
      %v488 = vadd.f32 %v376, %v484
      %v489 = vadd.f32 %v377, %v485
      %490 = vrot.lane.b32.xlu0 %v209, 112
      %v491 = vpop.permute.xlu0 %490
      %492 = vrot.lane.b32.xlu0 %v210, 112
      %v493 = vpop.permute.xlu0 %492
      %vm494 = vcmp.lt.s32.totalorder %v218, 112
      %v495 = vsel %vm494, %v491, %v493
      %v496 = vsel %vm494, %v493, %v491
      %v497 = vlaneseq
      %v498 = vshrl.u32 %v497, 7
      %v499 = vsub.s32 4, %v498
      %v500 = vrot.slane %v198, %v499
      %v501 = vlaneseq
      %v502 = vshrl.u32 %v501, 7
      %v503 = vsub.s32 4, %v502
      %v504 = vrot.slane %v199, %v503
      %v505 = vmul.f32 %v495, %v500
      %v506 = vmul.f32 %v496, %v504
      %s507 = sld [smem:[#allocation4 + $0x1c]]
      %v508 = vstv %s507
      %v509 = vmul.f32 %v508, %v505
      %v510 = vmul.f32 %v508, %v506
      %v511 = vadd.f32 %v392, %v509
      %v512 = vadd.f32 %v393, %v510
      %s513 = sld [smem:[#allocation4 + $0x1d]]
      %v514 = vstv %s513
      %v515 = vmul.f32 %v514, %v505
      %v516 = vmul.f32 %v514, %v506
      %v517 = vadd.f32 %v408, %v515
      %v518 = vadd.f32 %v409, %v516
      %s519 = sld [smem:[#allocation4 + $0x1e]]
      %v520 = vstv %s519
      %v521 = vmul.f32 %v520, %v505
      %v522 = vmul.f32 %v520, %v506
      %v523 = vadd.f32 %v424, %v521
      %v524 = vadd.f32 %v425, %v522
      %s525 = sld [smem:[#allocation4 + $0x1f]]
      %v526 = vstv %s525
      %v527 = vmul.f32 %v526, %v505
      %v528 = vmul.f32 %v526, %v506
      %v529 = vadd.f32 %v440, %v527
      %v530 = vadd.f32 %v441, %v528
      %s531 = sld [smem:[#allocation4 + $0x20]]
      %v532 = vstv %s531
      %v533 = vmul.f32 %v532, %v505
      %v534 = vmul.f32 %v532, %v506
      %v535 = vadd.f32 %v456, %v533
      %v536 = vadd.f32 %v457, %v534
      %s537 = sld [smem:[#allocation4 + $0x21]]
      %v538 = vstv %s537
      %v539 = vmul.f32 %v538, %v505
      %v540 = vmul.f32 %v538, %v506
      %v541 = vadd.f32 %v472, %v539
      %v542 = vadd.f32 %v473, %v540
      %s543 = sld [smem:[#allocation4 + $0x22]]
      %v544 = vstv %s543
      %v545 = vmul.f32 %v544, %v505
      %v546 = vmul.f32 %v544, %v506
      %v547 = vadd.f32 %v488, %v545
      %v548 = vadd.f32 %v489, %v546
      %549 = vrot.lane.b32.xlu0 %v209, 96
      %v550 = vpop.permute.xlu0 %549
      %551 = vrot.lane.b32.xlu0 %v210, 96
      %v552 = vpop.permute.xlu0 %551
      %vm553 = vcmp.lt.s32.totalorder %v218, 96
      %v554 = vsel %vm553, %v550, %v552
      %v555 = vsel %vm553, %v552, %v550
      %v556 = vlaneseq
      %v557 = vshrl.u32 %v556, 7
      %v558 = vsub.s32 5, %v557
      %v559 = vrot.slane %v198, %v558
      %v560 = vlaneseq
      %v561 = vshrl.u32 %v560, 7
      %v562 = vsub.s32 5, %v561
      %v563 = vrot.slane %v199, %v562
      %v564 = vmul.f32 %v554, %v559
      %v565 = vmul.f32 %v555, %v563
      %s566 = sld [smem:[#allocation4 + $0x23]]
      %v567 = vstv %s566
      %v568 = vmul.f32 %v567, %v564
      %v569 = vmul.f32 %v567, %v565
      %v570 = vadd.f32 %v511, %v568
      %v571 = vadd.f32 %v512, %v569
      %s572 = sld [smem:[#allocation4 + $0x24]]
      %v573 = vstv %s572
      %v574 = vmul.f32 %v573, %v564
      %v575 = vmul.f32 %v573, %v565
      %v576 = vadd.f32 %v517, %v574
      %v577 = vadd.f32 %v518, %v575
      %s578 = sld [smem:[#allocation4 + $0x25]]
      %v579 = vstv %s578
      %v580 = vmul.f32 %v579, %v564
      %v581 = vmul.f32 %v579, %v565
      %v582 = vadd.f32 %v523, %v580
      %v583 = vadd.f32 %v524, %v581
      %s584 = sld [smem:[#allocation4 + $0x26]]
      %v585 = vstv %s584
      %v586 = vmul.f32 %v585, %v564
      %v587 = vmul.f32 %v585, %v565
      %v588 = vadd.f32 %v529, %v586
      %v589 = vadd.f32 %v530, %v587
      %s590 = sld [smem:[#allocation4 + $0x27]]
      %v591 = vstv %s590
      %v592 = vmul.f32 %v591, %v564
      %v593 = vmul.f32 %v591, %v565
      %v594 = vadd.f32 %v535, %v592
      %v595 = vadd.f32 %v536, %v593
      %s596 = sld [smem:[#allocation4 + $0x28]]
      %v597 = vstv %s596
      %v598 = vmul.f32 %v597, %v564
      %v599 = vmul.f32 %v597, %v565
      %v600 = vadd.f32 %v541, %v598
      %v601 = vadd.f32 %v542, %v599
      %s602 = sld [smem:[#allocation4 + $0x29]]
      %v603 = vstv %s602
      %v604 = vmul.f32 %v603, %v564
      %v605 = vmul.f32 %v603, %v565
      %v606 = vadd.f32 %v547, %v604
      %v607 = vadd.f32 %v548, %v605
      %608 = vrot.lane.b32.xlu0 %v209, 80
      %v609 = vpop.permute.xlu0 %608
      %610 = vrot.lane.b32.xlu0 %v210, 80
      %v611 = vpop.permute.xlu0 %610
      %vm612 = vcmp.lt.s32.totalorder %v218, 80
      %v613 = vsel %vm612, %v609, %v611
      %v614 = vsel %vm612, %v611, %v609
      %v615 = vlaneseq
      %v616 = vshrl.u32 %v615, 7
      %v617 = vsub.s32 6, %v616
      %v618 = vrot.slane %v198, %v617
      %v619 = vlaneseq
      %v620 = vshrl.u32 %v619, 7
      %v621 = vsub.s32 6, %v620
      %v622 = vrot.slane %v199, %v621
      %v623 = vmul.f32 %v613, %v618
      %v624 = vmul.f32 %v614, %v622
      %s625 = sld [smem:[#allocation4 + $0x2a]]
      %v626 = vstv %s625
      %v627 = vmul.f32 %v626, %v623
      %v628 = vmul.f32 %v626, %v624
      %v629 = vadd.f32 %v570, %v627
      %v630 = vadd.f32 %v571, %v628
      %s631 = sld [smem:[#allocation4 + $0x2b]]
      %v632 = vstv %s631
      %v633 = vmul.f32 %v632, %v623
      %v634 = vmul.f32 %v632, %v624
      %v635 = vadd.f32 %v576, %v633
      %v636 = vadd.f32 %v577, %v634
      %s637 = sld [smem:[#allocation4 + $0x2c]]
      %v638 = vstv %s637
      %v639 = vmul.f32 %v638, %v623
      %v640 = vmul.f32 %v638, %v624
      %v641 = vadd.f32 %v582, %v639
      %v642 = vadd.f32 %v583, %v640
      %s643 = sld [smem:[#allocation4 + $0x2d]]
      %v644 = vstv %s643
      %v645 = vmul.f32 %v644, %v623
      %v646 = vmul.f32 %v644, %v624
      %v647 = vadd.f32 %v588, %v645
      %v648 = vadd.f32 %v589, %v646
      %s649 = sld [smem:[#allocation4 + $0x2e]]
      %v650 = vstv %s649
      %v651 = vmul.f32 %v650, %v623
      %v652 = vmul.f32 %v650, %v624
      %v653 = vadd.f32 %v594, %v651
      %v654 = vadd.f32 %v595, %v652
      %s655 = sld [smem:[#allocation4 + $0x2f]]
      %v656 = vstv %s655
      %v657 = vmul.f32 %v656, %v623
      %v658 = vmul.f32 %v656, %v624
      %v659 = vadd.f32 %v600, %v657
      %v660 = vadd.f32 %v601, %v658
      %s661 = sld [smem:[#allocation4 + $0x30]]
      %v662 = vstv %s661
      %v663 = vmul.f32 %v662, %v623
      %v664 = vmul.f32 %v662, %v624
      %v665 = vadd.f32 %v606, %v663
      %v666 = vadd.f32 %v607, %v664
      %v669 = vunpack.c.l.s4 1983009808
      %v670 = vunpack.c.0.s8 %v669
      %v671 = vlaneseq
      %v672 = vshrl.u32 %v671, 7
      %v673 = vsub.s32 %v670, %v672
      %v674 = vrot.slane %v197, %v673
      %v675 = vcombine.high %v674, %v674
      %678 = vrot.lane.b32.xlu0 %v674, 48
      %v679 = vpop.permute.xlu0 %678
      %680 = vrot.lane.b32.xlu0 %v675, 48
      %v681 = vpop.permute.xlu0 %680
      %v682 = vsel %vm219, %v679, %v681
      %v683 = vsel %vm219, %v681, %v679
      %v684 = vmul.f32 %v683, %v225
      %v685 = vmul.f32 %v682, %v229
      %s686 = sld [smem:[#allocation4 + $0x31]]
      %v687 = vstv %s686
      %v688 = vmul.f32 %v687, %v684
      %v689 = vmul.f32 %v687, %v685
      %v690 = vadd.f32 %v629, %v688
      %v691 = vadd.f32 %v630, %v689
      %s692 = sld [smem:[#allocation4 + $0x32]]
      %v693 = vstv %s692
      %v694 = vmul.f32 %v693, %v684
      %v695 = vmul.f32 %v693, %v685
      %v696 = vadd.f32 %v635, %v694
      %v697 = vadd.f32 %v636, %v695
      %s698 = sld [smem:[#allocation4 + $0x33]]
      %v699 = vstv %s698
      %v700 = vmul.f32 %v699, %v684
      %v701 = vmul.f32 %v699, %v685
      %v702 = vadd.f32 %v641, %v700
      %v703 = vadd.f32 %v642, %v701
      %s704 = sld [smem:[#allocation4 + $0x34]]
      %v705 = vstv %s704
      %v706 = vmul.f32 %v705, %v684
      %v707 = vmul.f32 %v705, %v685
      %v708 = vadd.f32 %v647, %v706
      %v709 = vadd.f32 %v648, %v707
      %s710 = sld [smem:[#allocation4 + $0x35]]
      %v711 = vstv %s710
      %v712 = vmul.f32 %v711, %v684
      %v713 = vmul.f32 %v711, %v685
      %v714 = vadd.f32 %v653, %v712
      %v715 = vadd.f32 %v654, %v713
      %s716 = sld [smem:[#allocation4 + $0x36]]
      %v717 = vstv %s716
      %v718 = vmul.f32 %v717, %v684
      %v719 = vmul.f32 %v717, %v685
      %v720 = vadd.f32 %v659, %v718
      %v721 = vadd.f32 %v660, %v719
      %s722 = sld [smem:[#allocation4 + $0x37]]
      %v723 = vstv %s722
      %v724 = vmul.f32 %v723, %v684
      %v725 = vmul.f32 %v723, %v685
      %v726 = vadd.f32 %v665, %v724
      %v727 = vadd.f32 %v666, %v725
      %728 = vrot.lane.b32.xlu0 %v674, 32
      %v729 = vpop.permute.xlu0 %728
      %730 = vrot.lane.b32.xlu0 %v675, 32
      %v731 = vpop.permute.xlu0 %730
      %v732 = vsel %vm264, %v729, %v731
      %v733 = vsel %vm264, %v731, %v729
      %v734 = vmul.f32 %v733, %v270
      %v735 = vmul.f32 %v732, %v274
      %s736 = sld [smem:[#allocation4 + $0x38]]
      %v737 = vstv %s736
      %v738 = vmul.f32 %v737, %v734
      %v739 = vmul.f32 %v737, %v735
      %v740 = vadd.f32 %v690, %v738
      %v741 = vadd.f32 %v691, %v739
      %s742 = sld [smem:[#allocation4 + $0x39]]
      %v743 = vstv %s742
      %v744 = vmul.f32 %v743, %v734
      %v745 = vmul.f32 %v743, %v735
      %v746 = vadd.f32 %v696, %v744
      %v747 = vadd.f32 %v697, %v745
      %s748 = sld [smem:[#allocation4 + $0x3a]]
      %v749 = vstv %s748
      %v750 = vmul.f32 %v749, %v734
      %v751 = vmul.f32 %v749, %v735
      %v752 = vadd.f32 %v702, %v750
      %v753 = vadd.f32 %v703, %v751
      %s754 = sld [smem:[#allocation4 + $0x3b]]
      %v755 = vstv %s754
      %v756 = vmul.f32 %v755, %v734
      %v757 = vmul.f32 %v755, %v735
      %v758 = vadd.f32 %v708, %v756
      %v759 = vadd.f32 %v709, %v757
      %s760 = sld [smem:[#allocation4 + $0x3c]]
      %v761 = vstv %s760
      %v762 = vmul.f32 %v761, %v734
      %v763 = vmul.f32 %v761, %v735
      %v764 = vadd.f32 %v714, %v762
      %v765 = vadd.f32 %v715, %v763
      %s766 = sld [smem:[#allocation4 + $0x3d]]
      %v767 = vstv %s766
      %v768 = vmul.f32 %v767, %v734
      %v769 = vmul.f32 %v767, %v735
      %v770 = vadd.f32 %v720, %v768
      %v771 = vadd.f32 %v721, %v769
      %s772 = sld [smem:[#allocation4 + $0x3e]]
      %v773 = vstv %s772
      %v774 = vmul.f32 %v773, %v734
      %v775 = vmul.f32 %v773, %v735
      %v776 = vadd.f32 %v726, %v774
      %v777 = vadd.f32 %v727, %v775
      %778 = vrot.lane.b32.xlu0 %v674, 16
      %v779 = vpop.permute.xlu0 %778
      %780 = vrot.lane.b32.xlu0 %v675, 16
      %v781 = vpop.permute.xlu0 %780
      %v782 = vsel %vm323, %v779, %v781
      %v783 = vsel %vm323, %v781, %v779
      %v784 = vmul.f32 %v783, %v329
      %v785 = vmul.f32 %v782, %v333
      %s786 = sld [smem:[#allocation4 + $0x3f]]
      %v787 = vstv %s786
      %v788 = vmul.f32 %v787, %v784
      %v789 = vmul.f32 %v787, %v785
      %v790 = vadd.f32 %v740, %v788
      %v791 = vadd.f32 %v741, %v789
      %s792 = sld [smem:[#allocation4 + $0x40]]
      %v793 = vstv %s792
      %v794 = vmul.f32 %v793, %v784
      %v795 = vmul.f32 %v793, %v785
      %v796 = vadd.f32 %v746, %v794
      %v797 = vadd.f32 %v747, %v795
      %s798 = sld [smem:[#allocation4 + $0x41]]
      %v799 = vstv %s798
      %v800 = vmul.f32 %v799, %v784
      %v801 = vmul.f32 %v799, %v785
      %v802 = vadd.f32 %v752, %v800
      %v803 = vadd.f32 %v753, %v801
      %s804 = sld [smem:[#allocation4 + $0x42]]
      %v805 = vstv %s804
      %v806 = vmul.f32 %v805, %v784
      %v807 = vmul.f32 %v805, %v785
      %v808 = vadd.f32 %v758, %v806
      %v809 = vadd.f32 %v759, %v807
      %s810 = sld [smem:[#allocation4 + $0x43]]
      %v811 = vstv %s810
      %v812 = vmul.f32 %v811, %v784
      %v813 = vmul.f32 %v811, %v785
      %v814 = vadd.f32 %v764, %v812
      %v815 = vadd.f32 %v765, %v813
      %s816 = sld [smem:[#allocation4 + $0x44]]
      %v817 = vstv %s816
      %v818 = vmul.f32 %v817, %v784
      %v819 = vmul.f32 %v817, %v785
      %v820 = vadd.f32 %v770, %v818
      %v821 = vadd.f32 %v771, %v819
      %s822 = sld [smem:[#allocation4 + $0x45]]
      %v823 = vstv %s822
      %v824 = vmul.f32 %v823, %v784
      %v825 = vmul.f32 %v823, %v785
      %v826 = vadd.f32 %v776, %v824
      %v827 = vadd.f32 %v777, %v825
      %s828 = sld [smem:[#allocation4 + $0x46]]
      %v829 = vstv %s828
      %v830 = vmul.f32 %v829, %v197
      %v833 = vunpack.c.l.s4 1983009808
      %v834 = vunpack.c.0.s8 %v833
      %v835 = vlaneseq
      %v836 = vshrl.u32 %v835, 7
      %v837 = vsub.s32 %v834, %v836
      %v838 = vrot.slane %v830, %v837
      %v839 = vcombine.high %v838, %v838
      %v842 = vadd.f32 %v790, %v838
      %v843 = vadd.f32 %v791, %v839
      %s844 = sld [smem:[#allocation4 + $0x47]]
      %v845 = vstv %s844
      %v846 = vmul.f32 %v845, %v197
      %v849 = vunpack.c.l.s4 1983009808
      %v850 = vunpack.c.0.s8 %v849
      %v851 = vlaneseq
      %v852 = vshrl.u32 %v851, 7
      %v853 = vsub.s32 %v850, %v852
      %v854 = vrot.slane %v846, %v853
      %v855 = vcombine.high %v854, %v854
      %v858 = vadd.f32 %v796, %v854
      %v859 = vadd.f32 %v797, %v855
      %s860 = sld [smem:[#allocation4 + $0x48]]
      %v861 = vstv %s860
      %v862 = vmul.f32 %v861, %v197
      %v865 = vunpack.c.l.s4 1983009808
      %v866 = vunpack.c.0.s8 %v865
      %v867 = vlaneseq
      %v868 = vshrl.u32 %v867, 7
      %v869 = vsub.s32 %v866, %v868
      %v870 = vrot.slane %v862, %v869
      %v871 = vcombine.high %v870, %v870
      %v874 = vadd.f32 %v802, %v870
      %v875 = vadd.f32 %v803, %v871
      %s876 = sld [smem:[#allocation4 + $0x49]]
      %v877 = vstv %s876
      %v878 = vmul.f32 %v877, %v197
      %v881 = vunpack.c.l.s4 1983009808
      %v882 = vunpack.c.0.s8 %v881
      %v883 = vlaneseq
      %v884 = vshrl.u32 %v883, 7
      %v885 = vsub.s32 %v882, %v884
      %v886 = vrot.slane %v878, %v885
      %v887 = vcombine.high %v886, %v886
      %v890 = vadd.f32 %v808, %v886
      %v891 = vadd.f32 %v809, %v887
      %s892 = sld [smem:[#allocation4 + $0x4a]]
      %v893 = vstv %s892
      %v894 = vmul.f32 %v893, %v197
      %v897 = vunpack.c.l.s4 1983009808
      %v898 = vunpack.c.0.s8 %v897
      %v899 = vlaneseq
      %v900 = vshrl.u32 %v899, 7
      %v901 = vsub.s32 %v898, %v900
      %v902 = vrot.slane %v894, %v901
      %v903 = vcombine.high %v902, %v902
      %v906 = vadd.f32 %v814, %v902
      %v907 = vadd.f32 %v815, %v903
      %s908 = sld [smem:[#allocation4 + $0x4b]]
      %v909 = vstv %s908
      %v910 = vmul.f32 %v909, %v197
      %v913 = vunpack.c.l.s4 1983009808
      %v914 = vunpack.c.0.s8 %v913
      %v915 = vlaneseq
      %v916 = vshrl.u32 %v915, 7
      %v917 = vsub.s32 %v914, %v916
      %v918 = vrot.slane %v910, %v917
      %v919 = vcombine.high %v918, %v918
      %v922 = vadd.f32 %v820, %v918
      %v923 = vadd.f32 %v821, %v919
      %s924 = sld [smem:[#allocation4 + $0x4c]]
      %v925 = vstv %s924
      %v926 = vmul.f32 %v925, %v197
      %v929 = vunpack.c.l.s4 1983009808
      %v930 = vunpack.c.0.s8 %v929
      %v931 = vlaneseq
      %v932 = vshrl.u32 %v931, 7
      %v933 = vsub.s32 %v930, %v932
      %v934 = vrot.slane %v926, %v933
      %v935 = vcombine.high %v934, %v934
      %v938 = vadd.f32 %v826, %v934
      %v939 = vadd.f32 %v827, %v935
      %940 = vrot.lane.b32.xlu0 %v674, 112
      %v941 = vpop.permute.xlu0 %940
      %942 = vrot.lane.b32.xlu0 %v675, 112
      %v943 = vpop.permute.xlu0 %942
      %v944 = vsel %vm494, %v941, %v943
      %v945 = vsel %vm494, %v943, %v941
      %v946 = vmul.f32 %v944, %v500
      %v947 = vmul.f32 %v945, %v504
      %s948 = sld [smem:[#allocation4 + $0x4d]]
      %v949 = vstv %s948
      %v950 = vmul.f32 %v949, %v946
      %v951 = vmul.f32 %v949, %v947
      %v952 = vadd.f32 %v842, %v950
      %v953 = vadd.f32 %v843, %v951
      %s954 = sld [smem:[#allocation4 + $0x4e]]
      %v955 = vstv %s954
      %v956 = vmul.f32 %v955, %v946
      %v957 = vmul.f32 %v955, %v947
      %v958 = vadd.f32 %v858, %v956
      %v959 = vadd.f32 %v859, %v957
      %s960 = sld [smem:[#allocation4 + $0x4f]]
      %v961 = vstv %s960
      %v962 = vmul.f32 %v961, %v946
      %v963 = vmul.f32 %v961, %v947
      %v964 = vadd.f32 %v874, %v962
      %v965 = vadd.f32 %v875, %v963
      %s966 = sld [smem:[#allocation4 + $0x50]]
      %v967 = vstv %s966
      %v968 = vmul.f32 %v967, %v946
      %v969 = vmul.f32 %v967, %v947
      %v970 = vadd.f32 %v890, %v968
      %v971 = vadd.f32 %v891, %v969
      %s972 = sld [smem:[#allocation4 + $0x51]]
      %v973 = vstv %s972
      %v974 = vmul.f32 %v973, %v946
      %v975 = vmul.f32 %v973, %v947
      %v976 = vadd.f32 %v906, %v974
      %v977 = vadd.f32 %v907, %v975
      %s978 = sld [smem:[#allocation4 + $0x52]]
      %v979 = vstv %s978
      %v980 = vmul.f32 %v979, %v946
      %v981 = vmul.f32 %v979, %v947
      %v982 = vadd.f32 %v922, %v980
      %v983 = vadd.f32 %v923, %v981
      %s984 = sld [smem:[#allocation4 + $0x53]]
      %v985 = vstv %s984
      %v986 = vmul.f32 %v985, %v946
      %v987 = vmul.f32 %v985, %v947
      %v988 = vadd.f32 %v938, %v986
      %v989 = vadd.f32 %v939, %v987
      %990 = vrot.lane.b32.xlu0 %v674, 96
      %v991 = vpop.permute.xlu0 %990
      %992 = vrot.lane.b32.xlu0 %v675, 96
      %v993 = vpop.permute.xlu0 %992
      %v994 = vsel %vm553, %v991, %v993
      %v995 = vsel %vm553, %v993, %v991
      %v996 = vmul.f32 %v994, %v559
      %v997 = vmul.f32 %v995, %v563
      %s998 = sld [smem:[#allocation4 + $0x54]]
      %v999 = vstv %s998
      %v1000 = vmul.f32 %v999, %v996
      %v1001 = vmul.f32 %v999, %v997
      %v1002 = vadd.f32 %v952, %v1000
      %v1003 = vadd.f32 %v953, %v1001
      %s1004 = sld [smem:[#allocation4 + $0x55]]
      %v1005 = vstv %s1004
      %v1006 = vmul.f32 %v1005, %v996
      %v1007 = vmul.f32 %v1005, %v997
      %v1008 = vadd.f32 %v958, %v1006
      %v1009 = vadd.f32 %v959, %v1007
      %s1010 = sld [smem:[#allocation4 + $0x56]]
      %v1011 = vstv %s1010
      %v1012 = vmul.f32 %v1011, %v996
      %v1013 = vmul.f32 %v1011, %v997
      %v1014 = vadd.f32 %v964, %v1012
      %v1015 = vadd.f32 %v965, %v1013
      %s1016 = sld [smem:[#allocation4 + $0x57]]
      %v1017 = vstv %s1016
      %v1018 = vmul.f32 %v1017, %v996
      %v1019 = vmul.f32 %v1017, %v997
      %v1020 = vadd.f32 %v970, %v1018
      %v1021 = vadd.f32 %v971, %v1019
      %s1022 = sld [smem:[#allocation4 + $0x58]]
      %v1023 = vstv %s1022
      %v1024 = vmul.f32 %v1023, %v996
      %v1025 = vmul.f32 %v1023, %v997
      %v1026 = vadd.f32 %v976, %v1024
      %v1027 = vadd.f32 %v977, %v1025
      %s1028 = sld [smem:[#allocation4 + $0x59]]
      %v1029 = vstv %s1028
      %v1030 = vmul.f32 %v1029, %v996
      %v1031 = vmul.f32 %v1029, %v997
      %v1032 = vadd.f32 %v982, %v1030
      %v1033 = vadd.f32 %v983, %v1031
      %s1034 = sld [smem:[#allocation4 + $0x5a]]
      %v1035 = vstv %s1034
      %v1036 = vmul.f32 %v1035, %v996
      %v1037 = vmul.f32 %v1035, %v997
      %v1038 = vadd.f32 %v988, %v1036
      %v1039 = vadd.f32 %v989, %v1037
      %1040 = vrot.lane.b32.xlu0 %v674, 80
      %v1041 = vpop.permute.xlu0 %1040
      %1042 = vrot.lane.b32.xlu0 %v675, 80
      %v1043 = vpop.permute.xlu0 %1042
      %v1044 = vsel %vm612, %v1041, %v1043
      %v1045 = vsel %vm612, %v1043, %v1041
      %v1046 = vmul.f32 %v1044, %v618
      %v1047 = vmul.f32 %v1045, %v622
      %s1048 = sld [smem:[#allocation4 + $0x5b]]
      %v1049 = vstv %s1048
      %v1050 = vmul.f32 %v1049, %v1046
      %v1051 = vmul.f32 %v1049, %v1047
      %v1052 = vadd.f32 %v1002, %v1050
      %v1053 = vadd.f32 %v1003, %v1051
      %s1054 = sld [smem:[#allocation4 + $0x5c]]
      %v1055 = vstv %s1054
      %v1056 = vmul.f32 %v1055, %v1046
      %v1057 = vmul.f32 %v1055, %v1047
      %v1058 = vadd.f32 %v1008, %v1056
      %v1059 = vadd.f32 %v1009, %v1057
      %s1060 = sld [smem:[#allocation4 + $0x5d]]
      %v1061 = vstv %s1060
      %v1062 = vmul.f32 %v1061, %v1046
      %v1063 = vmul.f32 %v1061, %v1047
      %v1064 = vadd.f32 %v1014, %v1062
      %v1065 = vadd.f32 %v1015, %v1063
      %s1066 = sld [smem:[#allocation4 + $0x5e]]
      %v1067 = vstv %s1066
      %v1068 = vmul.f32 %v1067, %v1046
      %v1069 = vmul.f32 %v1067, %v1047
      %v1070 = vadd.f32 %v1020, %v1068
      %v1071 = vadd.f32 %v1021, %v1069
      %s1072 = sld [smem:[#allocation4 + $0x5f]]
      %v1073 = vstv %s1072
      %v1074 = vmul.f32 %v1073, %v1046
      %v1075 = vmul.f32 %v1073, %v1047
      %v1076 = vadd.f32 %v1026, %v1074
      %v1077 = vadd.f32 %v1027, %v1075
      %s1078 = sld [smem:[#allocation4 + $0x60]]
      %v1079 = vstv %s1078
      %v1080 = vmul.f32 %v1079, %v1046
      %v1081 = vmul.f32 %v1079, %v1047
      %v1082 = vadd.f32 %v1032, %v1080
      %v1083 = vadd.f32 %v1033, %v1081
      %s1084 = sld [smem:[#allocation4 + $0x61]]
      %v1085 = vstv %s1084
      %v1086 = vmul.f32 %v1085, %v1046
      %v1087 = vmul.f32 %v1085, %v1047
      %v1088 = vadd.f32 %v1038, %v1086
      %v1089 = vadd.f32 %v1039, %v1087
      %1090 = vrot.lane.b32.xlu0 %v1052, 3
      %v1091 = vpop.permute.xlu0 %1090
      %1092 = vrot.lane.b32.xlu0 %v1053, 3
      %v1093 = vpop.permute.xlu0 %1092
      %vm1094 = vcmp.lt.s32.totalorder %v218, 3
      %v1095 = vsel %vm1094, %v1091, %v1093
      %v1096 = vsel %vm1094, %v1093, %v1091
      %v1097 = vlaneseq
      %v1098 = vshrl.u32 %v1097, 7
      %v1099 = vsub.s32 7, %v1098
      %v1100 = vrot.slane %v198, %v1099
      %v1101 = vlaneseq
      %v1102 = vshrl.u32 %v1101, 7
      %v1103 = vsub.s32 7, %v1102
      %v1104 = vrot.slane %v199, %v1103
      %v1105 = vmul.f32 %v1096, %v1100
      %v1106 = vmul.f32 %v1095, %v1104
      %1107 = vrot.lane.b32.xlu0 %v1058, 2
      %v1108 = vpop.permute.xlu0 %1107
      %1109 = vrot.lane.b32.xlu0 %v1059, 2
      %v1110 = vpop.permute.xlu0 %1109
      %vm1111 = vcmp.lt.s32.totalorder %v218, 2
      %v1112 = vsel %vm1111, %v1108, %v1110
      %v1113 = vsel %vm1111, %v1110, %v1108
      %v1114 = vlaneseq
      %v1115 = vshrl.u32 %v1114, 7
      %v1116 = vsub.s32 0, %v1115
      %v1117 = vrot.slane %v200, %v1116
      %v1118 = vlaneseq
      %v1119 = vshrl.u32 %v1118, 7
      %v1120 = vsub.s32 0, %v1119
      %v1121 = vrot.slane %v201, %v1120
      %v1122 = vmul.f32 %v1113, %v1117
      %v1123 = vmul.f32 %v1112, %v1121
      %v1124 = vadd.f32 %v1105, %v1122
      %v1125 = vadd.f32 %v1106, %v1123
      %1126 = vrot.lane.b32.xlu0 %v1064, 1
      %v1127 = vpop.permute.xlu0 %1126
      %1128 = vrot.lane.b32.xlu0 %v1065, 1
      %v1129 = vpop.permute.xlu0 %1128
      %vm1130 = vcmp.lt.s32.totalorder %v218, 1
      %v1131 = vsel %vm1130, %v1127, %v1129
      %v1132 = vsel %vm1130, %v1129, %v1127
      %v1133 = vlaneseq
      %v1134 = vshrl.u32 %v1133, 7
      %v1135 = vsub.s32 1, %v1134
      %v1136 = vrot.slane %v200, %v1135
      %v1137 = vlaneseq
      %v1138 = vshrl.u32 %v1137, 7
      %v1139 = vsub.s32 1, %v1138
      %v1140 = vrot.slane %v201, %v1139
      %v1141 = vmul.f32 %v1132, %v1136
      %v1142 = vmul.f32 %v1131, %v1140
      %v1143 = vadd.f32 %v1124, %v1141
      %v1144 = vadd.f32 %v1125, %v1142
      %v1145 = vadd.f32 %v1143, %v1070
      %v1146 = vadd.f32 %v1144, %v1071
      %1147 = vrot.lane.b32.xlu0 %v1076, 127
      %v1148 = vpop.permute.xlu0 %1147
      %1149 = vrot.lane.b32.xlu0 %v1077, 127
      %v1150 = vpop.permute.xlu0 %1149
      %vm1151 = vcmp.lt.s32.totalorder %v218, 127
      %v1152 = vsel %vm1151, %v1148, %v1150
      %v1153 = vsel %vm1151, %v1150, %v1148
      %v1154 = vlaneseq
      %v1155 = vshrl.u32 %v1154, 7
      %v1156 = vsub.s32 3, %v1155
      %v1157 = vrot.slane %v200, %v1156
      %v1158 = vlaneseq
      %v1159 = vshrl.u32 %v1158, 7
      %v1160 = vsub.s32 3, %v1159
      %v1161 = vrot.slane %v201, %v1160
      %v1162 = vmul.f32 %v1152, %v1157
      %v1163 = vmul.f32 %v1153, %v1161
      %v1164 = vadd.f32 %v1145, %v1162
      %v1165 = vadd.f32 %v1146, %v1163
      %1166 = vrot.lane.b32.xlu0 %v1082, 126
      %v1167 = vpop.permute.xlu0 %1166
      %1168 = vrot.lane.b32.xlu0 %v1083, 126
      %v1169 = vpop.permute.xlu0 %1168
      %vm1170 = vcmp.lt.s32.totalorder %v218, 126
      %v1171 = vsel %vm1170, %v1167, %v1169
      %v1172 = vsel %vm1170, %v1169, %v1167
      %v1173 = vlaneseq
      %v1174 = vshrl.u32 %v1173, 7
      %v1175 = vsub.s32 4, %v1174
      %v1176 = vrot.slane %v200, %v1175
      %v1177 = vlaneseq
      %v1178 = vshrl.u32 %v1177, 7
      %v1179 = vsub.s32 4, %v1178
      %v1180 = vrot.slane %v201, %v1179
      %v1181 = vmul.f32 %v1171, %v1176
      %v1182 = vmul.f32 %v1172, %v1180
      %v1183 = vadd.f32 %v1164, %v1181
      %v1184 = vadd.f32 %v1165, %v1182
      %1185 = vrot.lane.b32.xlu0 %v1088, 125
      %v1186 = vpop.permute.xlu0 %1185
      %1187 = vrot.lane.b32.xlu0 %v1089, 125
      %v1188 = vpop.permute.xlu0 %1187
      %vm1189 = vcmp.lt.s32.totalorder %v218, 125
      %v1190 = vsel %vm1189, %v1186, %v1188
      %v1191 = vsel %vm1189, %v1188, %v1186
      %v1192 = vlaneseq
      %v1193 = vshrl.u32 %v1192, 7
      %v1194 = vsub.s32 5, %v1193
      %v1195 = vrot.slane %v200, %v1194
      %v1196 = vlaneseq
      %v1197 = vshrl.u32 %v1196, 7
      %v1198 = vsub.s32 5, %v1197
      %v1199 = vrot.slane %v201, %v1198
      %v1200 = vmul.f32 %v1190, %v1195
      %v1201 = vmul.f32 %v1191, %v1199
      %v1202 = vadd.f32 %v1183, %v1200
      %v1203 = vadd.f32 %v1184, %v1201
      %v1204 = vxor.u32 %v1202, 2147483648
      %v1205 = vxor.u32 %v1203, 2147483648
      %v1206 = vmul.f32 %v1204, 1.442695
      %v1207 = vpow.pop %v1206
      %v1208 = vmul.f32 %v1205, 1.442695
      %v1209 = vpow.pop %v1208
      %v1210 = vadd.f32 %v1207, 1.0
      %v1211 = vadd.f32 %v1209, 1.0
      %v1212 = vrcp.pop %v1210
      %v1213 = vmul.f32 1.0, %v1212
      %v1214 = vrcp.pop %v1211
      %v1215 = vmul.f32 1.0, %v1214
      %v1218 = vcombine.low %v1213, %v1215
      %v1220 = vunpack.c.l.s4 1983009808
      %v1221 = vunpack.c.0.s8 %v1220
      %v1222 = vlaneseq
      %v1223 = vshrl.u32 %v1222, 7
      %v1224 = vsub.s32 %v1221, %v1223
      %v1225 = vrot.slane %v1218, %v1224
      %1227 = vst [vmem:[#allocation11] sm:$0xf] %v1225
    $region33: #{tpu_custom_call.1} parent=1 // pred_fallthru
      _
    // Predicated region
    $region34: #{tpu_custom_call.1} parent=1 // pred_check
      _
    $region35: #{tpu_custom_call.1} parent=1 // pred_check_branch
      %1229 = sbr.rel (0) target = $region37
    $region36: #{tpu_custom_call.1} parent=1 // pred_region
      %s1231 = ssub.s32 64, 64
      %1232 = vsyncadd [#allocation6], %s1231
      %s1234 = sshll.u32 [#allocation11], 4
      %s1235 = int_to_ptr.vmem [resolvable:$true] %s1234
      %1237 = dma.vmem_to_hbm [thread:$0]  %s1235, 64, %s3, [#allocation6]
    $region37: #{tpu_custom_call.1} parent=1 // pred_fallthru
      _
    // Predicated region
    $region38: #{tpu_custom_call.1} parent=1 // pred_check
      _
    $region39: #{tpu_custom_call.1} parent=1 // pred_check_branch
      %1239 = sbr.rel (0) target = $region41
    $region40: #{tpu_custom_call.1} parent=1 // pred_region
      %1240 = dma.done [#allocation6], 64
    $region41: #{tpu_custom_call.1} parent=1 // pred_fallthru
      _
    %1241 = vsyncpa [#allocation5], 1
    %1242 = vsyncpa [#allocation10], 1
    %1243 = vsyncpa [#allocation6], 1
    %1244 = vsyncpa [#allocation7], 1

</llo_original>
